<compile_context>
chip_gen: v7x
topology: tpu7x:2x2x1
jax: 0.10.0
libtpu: 0.0.40
codegen_flags: <defaults>
</compile_context>

<pallas_src>
import jax
import jax.numpy as jnp
from jax.experimental import pallas as pl
from jax.experimental.pallas import tpu as pltpu

_LANE = 128                      # lane width
_VMEM_LIMIT = 48 * 1024 * 1024   # <= v7x's 64 MiB per-TC VMEM; plenty on v5e/v6e


def _round_up(v, m):
    return (v + m - 1) // m * m


def _pad2d(x, rows, cols):
    r, c = x.shape
    return jnp.pad(x, ((0, rows - r), (0, cols - c)))


# ------------------------- Transform: XW = X @ W (row-tiled) -------------------------
def _transform_kernel(x_ref, w_ref, o_ref):
    o_ref[...] = jnp.dot(x_ref[...], w_ref[...],
                         preferred_element_type=jnp.float32).astype(o_ref.dtype)


def _transform(x, w, *, tile):
    n_pad, f_pad = x.shape
    h_pad = w.shape[1]
    return pl.pallas_call(
        _transform_kernel,
        out_shape=jax.ShapeDtypeStruct((n_pad, h_pad), jnp.bfloat16),
        grid_spec=pltpu.PrefetchScalarGridSpec(
            num_scalar_prefetch=0,
            grid=(n_pad // tile,),
            in_specs=[
                pl.BlockSpec((tile, f_pad), lambda i: (i, 0)),     # X row tile
                pl.BlockSpec((f_pad, h_pad), lambda i: (0, 0)),    # W (resident)
            ],
            out_specs=pl.BlockSpec((tile, h_pad), lambda i: (i, 0)),
        ),
        compiler_params=pltpu.CompilerParams(
            dimension_semantics=("parallel",),
            vmem_limit_bytes=_VMEM_LIMIT,
        ),
    )(x, w)


# ---- Propagate + fused epilogue:  out = (ReLU(A @ XW + b)) @ Wpost + bpost ----------
# Layer 1: Wpost = W2,  bpost = 0   -> emits next layer's transform directly (bf16)
# Layer 2: Wpost = Wc,  bpost = bc  -> emits classifier logits directly (f32)
def _prop_fused_kernel(a_ref, xw_ref, b_ref, wp_ref, bp_ref, o_ref, acc_ref):
    k = pl.program_id(1)

    @pl.when(k == 0)
    def _():
        acc_ref[...] = jnp.zeros_like(acc_ref)

    # Single MXU op per grid step: acc += A[i, k] @ XW[k]
    acc_ref[...] += jnp.dot(a_ref[...], xw_ref[...],
                            preferred_element_type=jnp.float32)

    @pl.when(k == pl.num_programs(1) - 1)
    def _():
        # Finalize: bias + ReLU (f32), then fused post-transform on the MXU.
        h = jnp.maximum(acc_ref[...] + b_ref[...], 0.0)
        out = jnp.dot(h.astype(wp_ref.dtype), wp_ref[...],
                      preferred_element_type=jnp.float32) + bp_ref[...]
        o_ref[...] = out.astype(o_ref.dtype)


def _propagate(a, xw, b, wp, bp, *, tile, out_dtype):
    n_pad = a.shape[0]
    h_pad = xw.shape[1]
    p_pad = wp.shape[1]
    grid = (n_pad // tile, n_pad // tile)
    return pl.pallas_call(
        _prop_fused_kernel,
        out_shape=jax.ShapeDtypeStruct((n_pad, p_pad), out_dtype),
        grid_spec=pltpu.PrefetchScalarGridSpec(
            num_scalar_prefetch=0,
            grid=grid,
            in_specs=[
                pl.BlockSpec((tile, tile), lambda i, k: (i, k)),     # A_hat tile
                pl.BlockSpec((tile, h_pad), lambda i, k: (k, 0)),    # XW reduction tile
                pl.BlockSpec((1, h_pad), lambda i, k: (0, 0)),       # bias (resident)
                pl.BlockSpec((h_pad, p_pad), lambda i, k: (0, 0)),   # Wpost (resident)
                pl.BlockSpec((1, p_pad), lambda i, k: (0, 0)),       # bpost (resident)
            ],
            out_specs=pl.BlockSpec((tile, p_pad), lambda i, k: (i, 0)),
            scratch_shapes=[pltpu.VMEM((tile, h_pad), jnp.float32)],
        ),
        compiler_params=pltpu.CompilerParams(
            dimension_semantics=("parallel", "arbitrary"),
            vmem_limit_bytes=_VMEM_LIMIT,
        ),
    )(a, xw, b, wp, bp)


@jax.jit
def gnn_forward(x, a_hat, w1, b1, w2, b2, wc, bc):
    n, f = x.shape
    h = w1.shape[1]
    o = wc.shape[1]

    # Node dim padded to a 256 multiple (>= 256-deep MXU contraction on v6e/v7x);
    # use a 512 tile when it divides evenly.  Feature dims padded to the 128 lane.
    n_pad = _round_up(n, 256)
    tile = 512 if n_pad % 512 == 0 else 256
    f_pad = _round_up(f, _LANE)
    h_pad = _round_up(h, _LANE)
    o_pad = _round_up(o, _LANE)

    # Zero-padded bf16 operands.  Zeros in padded A columns guarantee padded rows of
    # the intermediate (which are ReLU(b)@W != 0) never contribute to real rows.
    a_p = _pad2d(a_hat, n_pad, n_pad).astype(jnp.bfloat16)
    x_p = _pad2d(x, n_pad, f_pad).astype(jnp.bfloat16)
    w1_p = _pad2d(w1, f_pad, h_pad).astype(jnp.bfloat16)
    w2_p = _pad2d(w2, h_pad, h_pad).astype(jnp.bfloat16)
    wc_p = _pad2d(wc, h_pad, o_pad).astype(jnp.bfloat16)
    b1_p = _pad2d(b1.reshape(1, -1), 1, h_pad).astype(jnp.float32)
    b2_p = _pad2d(b2.reshape(1, -1), 1, h_pad).astype(jnp.float32)
    bc_p = _pad2d(bc.reshape(1, -1), 1, o_pad).astype(jnp.float32)
    zero_h = jnp.zeros((1, h_pad), jnp.float32)

    # XW1 = X @ W1                                              [n_pad, h_pad] bf16
    xw1 = _transform(x_p, w1_p, tile=tile)
    # Layer 1 propagate fused with layer 2's transform:
    #   XW2 = ReLU(A @ XW1 + b1) @ W2                           [n_pad, h_pad] bf16
    xw2 = _propagate(a_p, xw1, b1_p, w2_p, zero_h, tile=tile, out_dtype=jnp.bfloat16)
    # Layer 2 propagate fused with the classifier:
    #   out = ReLU(A @ XW2 + b2) @ Wc + bc                      [n_pad, o_pad] f32
    out = _propagate(a_p, xw2, b2_p, wc_p, bc_p, tile=tile, out_dtype=jnp.float32)
    return out[:n, :o]


# ------------------------------ plain-JAX glue ---------------------------------
def build_gcn_adjacency(edge_index, edge_weight, num_nodes):
    """Dense GCN-normalized adjacency A_hat = D^-1/2 (A + I) D^-1/2 (f32)."""
    src, dst = edge_index[0], edge_index[1]
    if edge_weight is None:
        edge_weight = jnp.ones(src.shape[0], dtype=jnp.float32)
    a = jnp.zeros((num_nodes, num_nodes), dtype=jnp.float32)
    a = a.at[dst, src].add(edge_weight)                    # messages flow src -> dst
    # add_remaining_self_loops semantics: only add a self-loop where none exists.
    diag = jnp.diagonal(a)
    a = a + jnp.diag(jnp.where(diag == 0.0, 1.0, 0.0))
    deg = jnp.sum(a, axis=1)
    d_inv_sqrt = jnp.where(deg > 0, 1.0 / jnp.sqrt(deg), 0.0)
    return a * d_inv_sqrt[:, None] * d_inv_sqrt[None, :]


def xavier_uniform(key, shape):
    fan_in, fan_out = shape[0], shape[1]
    limit = jnp.sqrt(6.0 / (fan_in + fan_out))
    return jax.random.uniform(key, shape, jnp.float32, -limit, limit)


def reference_forward(x, a_hat, w1, b1, w2, b2, wc, bc):
    h = jnp.maximum(a_hat @ (x @ w1) + b1, 0.0)
    h = jnp.maximum(a_hat @ (h @ w2) + b2, 0.0)
    return h @ wc + bc


if __name__ == "__main__":
    # Small shapes: 16 nodes, input_dim=32, hidden=32, output_dim=16, 2 layers.
    num_nodes, input_dim, hidden, output_dim = 16, 32, 32, 16

    key = jax.random.PRNGKey(0)
    k_x, k_e, k_w1, k_w2, k_wc, k_b1, k_b2, k_bc = jax.random.split(key, 8)

    x = jax.random.normal(k_x, (num_nodes, input_dim), dtype=jnp.float32)

    # Deterministic graph: a ring plus a few random extra edges.
    ring_src = jnp.arange(num_nodes, dtype=jnp.int32)
    ring_dst = (ring_src + 1) % num_nodes
    extra_src = jax.random.randint(k_e, (8,), 0, num_nodes, dtype=jnp.int32)
    extra_dst = (extra_src + 5) % num_nodes
    src = jnp.concatenate([ring_src, ring_dst, extra_src])
    dst = jnp.concatenate([ring_dst, ring_src, extra_dst])
    edge_index = jnp.stack([src, dst])          # [2, E], E = 40
    edge_weight = None

    a_hat = build_gcn_adjacency(edge_index, edge_weight, num_nodes)

    # Deterministic parameter init (xavier-uniform weights, small nonzero biases
    # so the bias path is actually exercised).
    w1 = xavier_uniform(k_w1, (input_dim, hidden))
    b1 = 0.1 * jax.random.normal(k_b1, (hidden,), jnp.float32)
    w2 = xavier_uniform(k_w2, (hidden, hidden))
    b2 = 0.1 * jax.random.normal(k_b2, (hidden,), jnp.float32)
    wc = xavier_uniform(k_wc, (hidden, output_dim))
    bc = 0.1 * jax.random.normal(k_bc, (output_dim,), jnp.float32)

    out = gnn_forward(x, a_hat, w1, b1, w2, b2, wc, bc)
    out = jax.block_until_ready(out)

    ref = reference_forward(x, a_hat, w1, b1, w2, b2, wc, bc)
    assert out.shape == (num_nodes, output_dim)
    # bf16 operands with f32 accumulation -> loosened tolerance vs f32 reference.
    assert jnp.allclose(out, ref, atol=5e-2, rtol=5e-2), (
        float(jnp.max(jnp.abs(out - ref))))

    print("KERNEL_OK")
</pallas_src>

<mosaic_0001>
module attributes {stable_mosaic.version = 11 : i64} {
  func.func @_transform_kernel(%arg0: i32, %arg1: memref<256x128xbf16, #tpu.memory_space<vmem>>, %arg2: memref<128x128xbf16, #tpu.memory_space<vmem>>, %arg3: memref<256x128xbf16, #tpu.memory_space<vmem>>) attributes {dimension_semantics = [#tpu.dimension_semantics<parallel>], iteration_bounds = array<i64: 1>, scalar_prefetch = 0 : i64, scratch_operands = 0 : i64, tpu.core_type = #tpu.core_type<tc>, window_params = [{transform_indices = @transform_0, window_bounds = array<i64: 256, 128>}, {pipeline_mode = #tpu.pipeline_mode<synchronous>, transform_indices = @transform_1, window_bounds = array<i64: 128, 128>}, {transform_indices = @transform_2, window_bounds = array<i64: 256, 128>}]} {
    %c0 = arith.constant 0 : index
    %c0_0 = arith.constant 0 : index
    %0 = vector.load %arg1[%c0, %c0_0] : memref<256x128xbf16, #tpu.memory_space<vmem>>, vector<256x128xbf16>
    %c0_1 = arith.constant 0 : index
    %c0_2 = arith.constant 0 : index
    %1 = vector.load %arg2[%c0_1, %c0_2] : memref<128x128xbf16, #tpu.memory_space<vmem>>, vector<128x128xbf16>
    %cst = arith.constant dense<0.000000e+00> : vector<256x128xf32>
    %2 = tpu.matmul %0, %1, %cst {dimension_numbers = #tpu.dot_dimension_numbers<[1], [0], [0], [1], [0, 0, 1, 1], [], []>} : vector<256x128xbf16>, vector<128x128xbf16>, vector<256x128xf32> -> vector<256x128xf32>
    %3 = arith.truncf %2 : vector<256x128xf32> to vector<256x128xbf16>
    %c0_3 = arith.constant 0 : index
    %c0_4 = arith.constant 0 : index
    %4 = vector.load %arg3[%c0_3, %c0_4] : memref<256x128xbf16, #tpu.memory_space<vmem>>, vector<256x128xbf16>
    tpu.vector_store %arg3[%c0_3, %c0_4], %3 {strides = array<i32>} : memref<256x128xbf16, #tpu.memory_space<vmem>>, vector<256x128xbf16>,
    return
  }
  func.func @transform_0(%arg0: i32) -> (i32, i32) {
    %c0_i32 = arith.constant 0 : i32
    %c0_i32_0 = arith.constant 0 : i32
    return %arg0, %c0_i32 : i32, i32
  }
  func.func @transform_1(%arg0: i32) -> (i32, i32) {
    %c0_i32 = arith.constant 0 : i32
    %c0_i32_0 = arith.constant 0 : i32
    %c0_i32_1 = arith.constant 0 : i32
    return %c0_i32, %c0_i32_0 : i32, i32
  }
  func.func @transform_2(%arg0: i32) -> (i32, i32) {
    %c0_i32 = arith.constant 0 : i32
    %c0_i32_0 = arith.constant 0 : i32
    return %arg0, %c0_i32 : i32, i32
  }
}

module attributes {stable_mosaic.version = 11 : i64} {
  func.func @_prop_fused_kernel(%arg0: i32, %arg1: i32, %arg2: memref<256x256xbf16, #tpu.memory_space<vmem>>, %arg3: memref<256x128xbf16, #tpu.memory_space<vmem>>, %arg4: memref<1x128xf32, #tpu.memory_space<vmem>>, %arg5: memref<128x128xbf16, #tpu.memory_space<vmem>>, %arg6: memref<1x128xf32, #tpu.memory_space<vmem>>, %arg7: memref<256x128xf32, #tpu.memory_space<vmem>>, %arg8: memref<256x128xf32, #tpu.memory_space<vmem>>) attributes {dimension_semantics = [#tpu.dimension_semantics<parallel>, #tpu.dimension_semantics<arbitrary>], iteration_bounds = array<i64: 1, 1>, scalar_prefetch = 0 : i64, scratch_operands = 1 : i64, tpu.core_type = #tpu.core_type<tc>, window_params = [{transform_indices = @transform_0, window_bounds = array<i64: 256, 256>}, {transform_indices = @transform_1, window_bounds = array<i64: 256, 128>}, {pipeline_mode = #tpu.pipeline_mode<synchronous>, transform_indices = @transform_2, window_bounds = array<i64: 1, 128>}, {pipeline_mode = #tpu.pipeline_mode<synchronous>, transform_indices = @transform_3, window_bounds = array<i64: 128, 128>}, {pipeline_mode = #tpu.pipeline_mode<synchronous>, transform_indices = @transform_4, window_bounds = array<i64: 1, 128>}, {transform_indices = @transform_5, window_bounds = array<i64: 256, 128>}]} {
    %c0_i32 = arith.constant 0 : i32
    %0 = arith.cmpi eq, %arg1, %c0_i32 : i32
    %1 = arith.extui %0 : i1 to i32
    %c0_i32_0 = arith.constant 0 : i32
    %2 = arith.cmpi ne, %1, %c0_i32_0 : i32
    scf.if %2 {
      %cst_10 = arith.constant 0.000000e+00 : f32
      %12 = vector.broadcast %cst_10 : f32 to vector<256x128xf32>
      %c0_11 = arith.constant 0 : index
      %c0_12 = arith.constant 0 : index
      %13 = vector.load %arg8[%c0_11, %c0_12] : memref<256x128xf32, #tpu.memory_space<vmem>>, vector<256x128xf32>
      tpu.vector_store %arg8[%c0_11, %c0_12], %12 {strides = array<i32>} : memref<256x128xf32, #tpu.memory_space<vmem>>, vector<256x128xf32>,
    } else {
    }
    %c0 = arith.constant 0 : index
    %c0_1 = arith.constant 0 : index
    %3 = vector.load %arg8[%c0, %c0_1] : memref<256x128xf32, #tpu.memory_space<vmem>>, vector<256x128xf32>
    %c0_2 = arith.constant 0 : index
    %c0_3 = arith.constant 0 : index
    %4 = vector.load %arg2[%c0_2, %c0_3] : memref<256x256xbf16, #tpu.memory_space<vmem>>, vector<256x256xbf16>
    %c0_4 = arith.constant 0 : index
    %c0_5 = arith.constant 0 : index
    %5 = vector.load %arg3[%c0_4, %c0_5] : memref<256x128xbf16, #tpu.memory_space<vmem>>, vector<256x128xbf16>
    %cst = arith.constant dense<0.000000e+00> : vector<256x128xf32>
    %6 = tpu.matmul %4, %5, %cst {dimension_numbers = #tpu.dot_dimension_numbers<[1], [0], [0], [1], [0, 0, 1, 1], [], []>} : vector<256x256xbf16>, vector<256x128xbf16>, vector<256x128xf32> -> vector<256x128xf32>
    %7 = arith.addf %3, %6 : vector<256x128xf32>
    %c0_6 = arith.constant 0 : index
    %c0_7 = arith.constant 0 : index
    %8 = vector.load %arg8[%c0_6, %c0_7] : memref<256x128xf32, #tpu.memory_space<vmem>>, vector<256x128xf32>
    tpu.vector_store %arg8[%c0_6, %c0_7], %7 {strides = array<i32>} : memref<256x128xf32, #tpu.memory_space<vmem>>, vector<256x128xf32>,
    %c0_i32_8 = arith.constant 0 : i32
    %9 = arith.cmpi eq, %arg1, %c0_i32_8 : i32
    %10 = arith.extui %9 : i1 to i32
    %c0_i32_9 = arith.constant 0 : i32
    %11 = arith.cmpi ne, %10, %c0_i32_9 : i32
    scf.if %11 {
      %c0_10 = arith.constant 0 : index
      %c0_11 = arith.constant 0 : index
      %12 = vector.load %arg8[%c0_10, %c0_11] : memref<256x128xf32, #tpu.memory_space<vmem>>, vector<256x128xf32>
      %c0_12 = arith.constant 0 : index
      %c0_13 = arith.constant 0 : index
      %13 = vector.load %arg4[%c0_12, %c0_13] : memref<1x128xf32, #tpu.memory_space<vmem>>, vector<1x128xf32>
      %14 = vector.broadcast %13 : vector<1x128xf32> to vector<256x128xf32>
      %15 = arith.addf %12, %14 : vector<256x128xf32>
      %cst_14 = arith.constant 0.000000e+00 : f32
      %16 = vector.broadcast %cst_14 : f32 to vector<256x128xf32>
      %17 = arith.maximumf %15, %16 : vector<256x128xf32>
      %18 = arith.truncf %17 : vector<256x128xf32> to vector<256x128xbf16>
      %c0_15 = arith.constant 0 : index
      %c0_16 = arith.constant 0 : index
      %19 = vector.load %arg5[%c0_15, %c0_16] : memref<128x128xbf16, #tpu.memory_space<vmem>>, vector<128x128xbf16>
      %cst_17 = arith.constant dense<0.000000e+00> : vector<256x128xf32>
      %20 = tpu.matmul %18, %19, %cst_17 {dimension_numbers = #tpu.dot_dimension_numbers<[1], [0], [0], [1], [0, 0, 1, 1], [], []>} : vector<256x128xbf16>, vector<128x128xbf16>, vector<256x128xf32> -> vector<256x128xf32>
      %c0_18 = arith.constant 0 : index
      %c0_19 = arith.constant 0 : index
      %21 = vector.load %arg6[%c0_18, %c0_19] : memref<1x128xf32, #tpu.memory_space<vmem>>, vector<1x128xf32>
      %22 = vector.broadcast %21 : vector<1x128xf32> to vector<256x128xf32>
      %23 = arith.addf %20, %22 : vector<256x128xf32>
      %c0_20 = arith.constant 0 : index
      %c0_21 = arith.constant 0 : index
      %24 = vector.load %arg7[%c0_20, %c0_21] : memref<256x128xf32, #tpu.memory_space<vmem>>, vector<256x128xf32>
      tpu.vector_store %arg7[%c0_20, %c0_21], %23 {strides = array<i32>} : memref<256x128xf32, #tpu.memory_space<vmem>>, vector<256x128xf32>,
    } else {
    }
    return
  }
  func.func @transform_0(%arg0: i32, %arg1: i32) -> (i32, i32) {
    %c0_i32 = arith.constant 0 : i32
    return %arg0, %arg1 : i32, i32
  }
  func.func @transform_1(%arg0: i32, %arg1: i32) -> (i32, i32) {
    %c0_i32 = arith.constant 0 : i32
    %c0_i32_0 = arith.constant 0 : i32
    return %arg1, %c0_i32 : i32, i32
  }
  func.func @transform_2(%arg0: i32, %arg1: i32) -> (i32, i32) {
    %c0_i32 = arith.constant 0 : i32
    %c0_i32_0 = arith.constant 0 : i32
    %c0_i32_1 = arith.constant 0 : i32
    return %c0_i32, %c0_i32_0 : i32, i32
  }
  func.func @transform_3(%arg0: i32, %arg1: i32) -> (i32, i32) {
    %c0_i32 = arith.constant 0 : i32
    %c0_i32_0 = arith.constant 0 : i32
    %c0_i32_1 = arith.constant 0 : i32
    return %c0_i32, %c0_i32_0 : i32, i32
  }
  func.func @transform_4(%arg0: i32, %arg1: i32) -> (i32, i32) {
    %c0_i32 = arith.constant 0 : i32
    %c0_i32_0 = arith.constant 0 : i32
    %c0_i32_1 = arith.constant 0 : i32
    return %c0_i32, %c0_i32_0 : i32, i32
  }
  func.func @transform_5(%arg0: i32, %arg1: i32) -> (i32, i32) {
    %c0_i32 = arith.constant 0 : i32
    %c0_i32_0 = arith.constant 0 : i32
    return %arg0, %c0_i32 : i32, i32
  }
}

module attributes {stable_mosaic.version = 11 : i64} {
  func.func @_prop_fused_kernel(%arg0: i32, %arg1: i32, %arg2: memref<256x256xbf16, #tpu.memory_space<vmem>>, %arg3: memref<256x128xbf16, #tpu.memory_space<vmem>>, %arg4: memref<1x128xf32, #tpu.memory_space<vmem>>, %arg5: memref<128x128xbf16, #tpu.memory_space<vmem>>, %arg6: memref<1x128xf32, #tpu.memory_space<vmem>>, %arg7: memref<256x128xbf16, #tpu.memory_space<vmem>>, %arg8: memref<256x128xf32, #tpu.memory_space<vmem>>) attributes {dimension_semantics = [#tpu.dimension_semantics<parallel>, #tpu.dimension_semantics<arbitrary>], iteration_bounds = array<i64: 1, 1>, scalar_prefetch = 0 : i64, scratch_operands = 1 : i64, tpu.core_type = #tpu.core_type<tc>, window_params = [{transform_indices = @transform_0, window_bounds = array<i64: 256, 256>}, {transform_indices = @transform_1, window_bounds = array<i64: 256, 128>}, {pipeline_mode = #tpu.pipeline_mode<synchronous>, transform_indices = @transform_2, window_bounds = array<i64: 1, 128>}, {pipeline_mode = #tpu.pipeline_mode<synchronous>, transform_indices = @transform_3, window_bounds = array<i64: 128, 128>}, {pipeline_mode = #tpu.pipeline_mode<synchronous>, transform_indices = @transform_4, window_bounds = array<i64: 1, 128>}, {transform_indices = @transform_5, window_bounds = array<i64: 256, 128>}]} {
    %c0_i32 = arith.constant 0 : i32
    %0 = arith.cmpi eq, %arg1, %c0_i32 : i32
    %1 = arith.extui %0 : i1 to i32
    %c0_i32_0 = arith.constant 0 : i32
    %2 = arith.cmpi ne, %1, %c0_i32_0 : i32
    scf.if %2 {
      %cst_10 = arith.constant 0.000000e+00 : f32
      %12 = vector.broadcast %cst_10 : f32 to vector<256x128xf32>
      %c0_11 = arith.constant 0 : index
      %c0_12 = arith.constant 0 : index
      %13 = vector.load %arg8[%c0_11, %c0_12] : memref<256x128xf32, #tpu.memory_space<vmem>>, vector<256x128xf32>
      tpu.vector_store %arg8[%c0_11, %c0_12], %12 {strides = array<i32>} : memref<256x128xf32, #tpu.memory_space<vmem>>, vector<256x128xf32>,
    } else {
    }
    %c0 = arith.constant 0 : index
    %c0_1 = arith.constant 0 : index
    %3 = vector.load %arg8[%c0, %c0_1] : memref<256x128xf32, #tpu.memory_space<vmem>>, vector<256x128xf32>
    %c0_2 = arith.constant 0 : index
    %c0_3 = arith.constant 0 : index
    %4 = vector.load %arg2[%c0_2, %c0_3] : memref<256x256xbf16, #tpu.memory_space<vmem>>, vector<256x256xbf16>
    %c0_4 = arith.constant 0 : index
    %c0_5 = arith.constant 0 : index
    %5 = vector.load %arg3[%c0_4, %c0_5] : memref<256x128xbf16, #tpu.memory_space<vmem>>, vector<256x128xbf16>
    %cst = arith.constant dense<0.000000e+00> : vector<256x128xf32>
    %6 = tpu.matmul %4, %5, %cst {dimension_numbers = #tpu.dot_dimension_numbers<[1], [0], [0], [1], [0, 0, 1, 1], [], []>} : vector<256x256xbf16>, vector<256x128xbf16>, vector<256x128xf32> -> vector<256x128xf32>
    %7 = arith.addf %3, %6 : vector<256x128xf32>
    %c0_6 = arith.constant 0 : index
    %c0_7 = arith.constant 0 : index
    %8 = vector.load %arg8[%c0_6, %c0_7] : memref<256x128xf32, #tpu.memory_space<vmem>>, vector<256x128xf32>
    tpu.vector_store %arg8[%c0_6, %c0_7], %7 {strides = array<i32>} : memref<256x128xf32, #tpu.memory_space<vmem>>, vector<256x128xf32>,
    %c0_i32_8 = arith.constant 0 : i32
    %9 = arith.cmpi eq, %arg1, %c0_i32_8 : i32
    %10 = arith.extui %9 : i1 to i32
    %c0_i32_9 = arith.constant 0 : i32
    %11 = arith.cmpi ne, %10, %c0_i32_9 : i32
    scf.if %11 {
      %c0_10 = arith.constant 0 : index
      %c0_11 = arith.constant 0 : index
      %12 = vector.load %arg8[%c0_10, %c0_11] : memref<256x128xf32, #tpu.memory_space<vmem>>, vector<256x128xf32>
      %c0_12 = arith.constant 0 : index
      %c0_13 = arith.constant 0 : index
      %13 = vector.load %arg4[%c0_12, %c0_13] : memref<1x128xf32, #tpu.memory_space<vmem>>, vector<1x128xf32>
      %14 = vector.broadcast %13 : vector<1x128xf32> to vector<256x128xf32>
      %15 = arith.addf %12, %14 : vector<256x128xf32>
      %cst_14 = arith.constant 0.000000e+00 : f32
      %16 = vector.broadcast %cst_14 : f32 to vector<256x128xf32>
      %17 = arith.maximumf %15, %16 : vector<256x128xf32>
      %18 = arith.truncf %17 : vector<256x128xf32> to vector<256x128xbf16>
      %c0_15 = arith.constant 0 : index
      %c0_16 = arith.constant 0 : index
      %19 = vector.load %arg5[%c0_15, %c0_16] : memref<128x128xbf16, #tpu.memory_space<vmem>>, vector<128x128xbf16>
      %cst_17 = arith.constant dense<0.000000e+00> : vector<256x128xf32>
      %20 = tpu.matmul %18, %19, %cst_17 {dimension_numbers = #tpu.dot_dimension_numbers<[1], [0], [0], [1], [0, 0, 1, 1], [], []>} : vector<256x128xbf16>, vector<128x128xbf16>, vector<256x128xf32> -> vector<256x128xf32>
      %c0_18 = arith.constant 0 : index
      %c0_19 = arith.constant 0 : index
      %21 = vector.load %arg6[%c0_18, %c0_19] : memref<1x128xf32, #tpu.memory_space<vmem>>, vector<1x128xf32>
      %22 = vector.broadcast %21 : vector<1x128xf32> to vector<256x128xf32>
      %23 = arith.addf %20, %22 : vector<256x128xf32>
      %24 = arith.truncf %23 : vector<256x128xf32> to vector<256x128xbf16>
      %c0_20 = arith.constant 0 : index
      %c0_21 = arith.constant 0 : index
      %25 = vector.load %arg7[%c0_20, %c0_21] : memref<256x128xbf16, #tpu.memory_space<vmem>>, vector<256x128xbf16>
      tpu.vector_store %arg7[%c0_20, %c0_21], %24 {strides = array<i32>} : memref<256x128xbf16, #tpu.memory_space<vmem>>, vector<256x128xbf16>,
    } else {
    }
    return
  }
  func.func @transform_0(%arg0: i32, %arg1: i32) -> (i32, i32) {
    %c0_i32 = arith.constant 0 : i32
    return %arg0, %arg1 : i32, i32
  }
  func.func @transform_1(%arg0: i32, %arg1: i32) -> (i32, i32) {
    %c0_i32 = arith.constant 0 : i32
    %c0_i32_0 = arith.constant 0 : i32
    return %arg1, %c0_i32 : i32, i32
  }
  func.func @transform_2(%arg0: i32, %arg1: i32) -> (i32, i32) {
    %c0_i32 = arith.constant 0 : i32
    %c0_i32_0 = arith.constant 0 : i32
    %c0_i32_1 = arith.constant 0 : i32
    return %c0_i32, %c0_i32_0 : i32, i32
  }
  func.func @transform_3(%arg0: i32, %arg1: i32) -> (i32, i32) {
    %c0_i32 = arith.constant 0 : i32
    %c0_i32_0 = arith.constant 0 : i32
    %c0_i32_1 = arith.constant 0 : i32
    return %c0_i32, %c0_i32_0 : i32, i32
  }
  func.func @transform_4(%arg0: i32, %arg1: i32) -> (i32, i32) {
    %c0_i32 = arith.constant 0 : i32
    %c0_i32_0 = arith.constant 0 : i32
    %c0_i32_1 = arith.constant 0 : i32
    return %c0_i32, %c0_i32_0 : i32, i32
  }
  func.func @transform_5(%arg0: i32, %arg1: i32) -> (i32, i32) {
    %c0_i32 = arith.constant 0 : i32
    %c0_i32_0 = arith.constant 0 : i32
    return %arg0, %c0_i32 : i32, i32
  }
}

</mosaic_0001>

<llo_original>
// kernel: gnn_forward.3
$region0: #{gnn_forward.3}
  #allocation0 [shape = 'u32[]', space=smem, size = 0x4, offset = 0x4, fixed_abs, tag = 'smem constant byte address 0x4 - core index']
  #allocation1 [shape = 'u32[144,128]{1,0:T(1,128)}', space=vmem, size = 0x12000, scoped, tag = 'internal scratch']
  %s0 = inlined_call_operand.vmem [shape: bf16[256,128], index: 0, kind: input, shape index: {}]
  %s1 = inlined_call_operand.vmem [shape: bf16[128,128], index: 1, kind: input, shape index: {}]
  %s2 = inlined_call_operand.vmem [shape: bf16[256,128], index: 2, kind: output, shape index: {}]
  %s3 = sld [smem:[#allocation0]]
  $region18: #{gnn_forward.3} parent=0
    _
  %s5 = ssub.s32 1, %s3
  %s6 = scalar_select 0, %s5, %s3
  // Predicated region
  $region2: #{gnn_forward.3} parent=0 // pred_check
    _
  $region3: #{gnn_forward.3} parent=0 // pred_check_branch
    %8 = sbr.rel (0) target = $region5
  $region4: #{gnn_forward.3} parent=0 // pred_region
    _
  $region5: #{gnn_forward.3} parent=0 // pred_fallthru
    _
  // Predicated region
  $region6: #{gnn_forward.3} parent=0 // pred_check
    _
  $region7: #{gnn_forward.3} parent=0 // pred_check_branch
    %10 = sbr.rel (0) target = $region9
  $region8: #{gnn_forward.3} parent=0 // pred_region
    _
  $region9: #{gnn_forward.3} parent=0 // pred_fallthru
    _
  %v12 = vld [vmem:[%s0] sm:$0xf]
  %v13 = vld [vmem:[%s0 + $0x4] sm:$0xf]
  %v14 = vld [vmem:[%s0 + $0x8] sm:$0xf]
  %v15 = vld [vmem:[%s0 + $0xc] sm:$0xf]
  %v16 = vld [vmem:[%s0 + $0x10] sm:$0xf]
  %v17 = vld [vmem:[%s0 + $0x14] sm:$0xf]
  %v18 = vld [vmem:[%s0 + $0x18] sm:$0xf]
  %v19 = vld [vmem:[%s0 + $0x1c] sm:$0xf]
  %v20 = vld [vmem:[%s0 + $0x20] sm:$0xf]
  %v21 = vld [vmem:[%s0 + $0x24] sm:$0xf]
  %v22 = vld [vmem:[%s0 + $0x28] sm:$0xf]
  %v23 = vld [vmem:[%s0 + $0x2c] sm:$0xf]
  %v24 = vld [vmem:[%s0 + $0x30] sm:$0xf]
  %v25 = vld [vmem:[%s0 + $0x34] sm:$0xf]
  %v26 = vld [vmem:[%s0 + $0x38] sm:$0xf]
  %v27 = vld [vmem:[%s0 + $0x3c] sm:$0xf]
  %v28 = vld [vmem:[%s0 + $0x40] sm:$0xf]
  %v29 = vld [vmem:[%s0 + $0x44] sm:$0xf]
  %v30 = vld [vmem:[%s0 + $0x48] sm:$0xf]
  %v31 = vld [vmem:[%s0 + $0x4c] sm:$0xf]
  %v32 = vld [vmem:[%s0 + $0x50] sm:$0xf]
  %v33 = vld [vmem:[%s0 + $0x54] sm:$0xf]
  %v34 = vld [vmem:[%s0 + $0x58] sm:$0xf]
  %v35 = vld [vmem:[%s0 + $0x5c] sm:$0xf]
  %v36 = vld [vmem:[%s0 + $0x60] sm:$0xf]
  %v37 = vld [vmem:[%s0 + $0x64] sm:$0xf]
  %v38 = vld [vmem:[%s0 + $0x68] sm:$0xf]
  %v39 = vld [vmem:[%s0 + $0x6c] sm:$0xf]
  %v40 = vld [vmem:[%s0 + $0x70] sm:$0xf]
  %v41 = vld [vmem:[%s0 + $0x74] sm:$0xf]
  %v42 = vld [vmem:[%s0 + $0x78] sm:$0xf]
  %v43 = vld [vmem:[%s0 + $0x7c] sm:$0xf]
  %v44 = vld [vmem:[%s1] sm:$0xf]
  %v45 = vld [vmem:[%s1 + $0x4] sm:$0xf]
  %v46 = vld [vmem:[%s1 + $0x8] sm:$0xf]
  %v47 = vld [vmem:[%s1 + $0xc] sm:$0xf]
  %v48 = vld [vmem:[%s1 + $0x10] sm:$0xf]
  %v49 = vld [vmem:[%s1 + $0x14] sm:$0xf]
  %v50 = vld [vmem:[%s1 + $0x18] sm:$0xf]
  %v51 = vld [vmem:[%s1 + $0x1c] sm:$0xf]
  %v52 = vld [vmem:[%s1 + $0x20] sm:$0xf]
  %v53 = vld [vmem:[%s1 + $0x24] sm:$0xf]
  %v54 = vld [vmem:[%s1 + $0x28] sm:$0xf]
  %v55 = vld [vmem:[%s1 + $0x2c] sm:$0xf]
  %v56 = vld [vmem:[%s1 + $0x30] sm:$0xf]
  %v57 = vld [vmem:[%s1 + $0x34] sm:$0xf]
  %v58 = vld [vmem:[%s1 + $0x38] sm:$0xf]
  %v59 = vld [vmem:[%s1 + $0x3c] sm:$0xf]
  %v92 = vunpack.c.l.b16 %v12
  %v93 = vunpack.c.l.b16 %v13
  %v94 = vunpack.c.l.b16 %v14
  %v95 = vunpack.c.l.b16 %v15
  %v96 = vunpack.c.l.b16 %v16
  %v97 = vunpack.c.l.b16 %v17
  %v98 = vunpack.c.l.b16 %v18
  %v99 = vunpack.c.l.b16 %v19
  %v100 = vunpack.c.l.b16 %v20
  %v101 = vunpack.c.l.b16 %v21
  %v102 = vunpack.c.l.b16 %v22
  %v103 = vunpack.c.l.b16 %v23
  %v104 = vunpack.c.l.b16 %v24
  %v105 = vunpack.c.l.b16 %v25
  %v106 = vunpack.c.l.b16 %v26
  %v107 = vunpack.c.l.b16 %v27
  %v108 = vunpack.c.l.b16 %v28
  %v109 = vunpack.c.l.b16 %v29
  %v110 = vunpack.c.l.b16 %v30
  %v111 = vunpack.c.l.b16 %v31
  %v112 = vunpack.c.l.b16 %v32
  %v113 = vunpack.c.l.b16 %v33
  %v114 = vunpack.c.l.b16 %v34
  %v115 = vunpack.c.l.b16 %v35
  %v116 = vunpack.c.l.b16 %v36
  %v117 = vunpack.c.l.b16 %v37
  %v118 = vunpack.c.l.b16 %v38
  %v119 = vunpack.c.l.b16 %v39
  %v120 = vunpack.c.l.b16 %v40
  %v121 = vunpack.c.l.b16 %v41
  %v122 = vunpack.c.l.b16 %v42
  %v123 = vunpack.c.l.b16 %v43
  %v124 = vpack.c.b16 %v93, %v92
  %v125 = vpack.c.b16 %v95, %v94
  %v126 = vpack.c.b16 %v97, %v96
  %v127 = vpack.c.b16 %v99, %v98
  %v128 = vpack.c.b16 %v101, %v100
  %v129 = vpack.c.b16 %v103, %v102
  %v130 = vpack.c.b16 %v105, %v104
  %v131 = vpack.c.b16 %v107, %v106
  %v132 = vpack.c.b16 %v109, %v108
  %v133 = vpack.c.b16 %v111, %v110
  %v134 = vpack.c.b16 %v113, %v112
  %v135 = vpack.c.b16 %v115, %v114
  %v136 = vpack.c.b16 %v117, %v116
  %v137 = vpack.c.b16 %v119, %v118
  %v138 = vpack.c.b16 %v121, %v120
  %v139 = vpack.c.b16 %v123, %v122
  %v172 = vunpack.c.l.b16 %v44
  %v173 = vunpack.c.l.b16 %v45
  %v174 = vunpack.c.l.b16 %v46
  %v175 = vunpack.c.l.b16 %v47
  %v176 = vunpack.c.l.b16 %v48
  %v177 = vunpack.c.l.b16 %v49
  %v178 = vunpack.c.l.b16 %v50
  %v179 = vunpack.c.l.b16 %v51
  %v180 = vunpack.c.l.b16 %v52
  %v181 = vunpack.c.l.b16 %v53
  %v182 = vunpack.c.l.b16 %v54
  %v183 = vunpack.c.l.b16 %v55
  %v184 = vunpack.c.l.b16 %v56
  %v185 = vunpack.c.l.b16 %v57
  %v186 = vunpack.c.l.b16 %v58
  %v187 = vunpack.c.l.b16 %v59
  %v188 = vpack.c.b16 %v173, %v172
  %v189 = vpack.c.b16 %v175, %v174
  %v190 = vpack.c.b16 %v177, %v176
  %v191 = vpack.c.b16 %v179, %v178
  %v192 = vpack.c.b16 %v181, %v180
  %v193 = vpack.c.b16 %v183, %v182
  %v194 = vpack.c.b16 %v185, %v184
  %v195 = vpack.c.b16 %v187, %v186
  %204 = vmatprep.subr.bf16.mxu0 0
  %205 = vmatpush1.bf16.msra.mxu0 %v188
  %206 = vmatprep.subr.bf16.mxu0 0
  %207 = vmatpush1.bf16.msra.mxu0 %v189
  %208 = vmatprep.subr.bf16.mxu0 0
  %209 = vmatpush1.bf16.msra.mxu0 %v190
  %210 = vmatprep.subr.bf16.mxu0 0
  %211 = vmatpush1.bf16.msra.mxu0 %v191
  %212 = vmatprep.subr.bf16.mxu0 0
  %213 = vmatpush1.bf16.msra.mxu0 %v192
  %214 = vmatprep.subr.bf16.mxu0 0
  %215 = vmatpush1.bf16.msra.mxu0 %v193
  %216 = vmatprep.subr.bf16.mxu0 0
  %217 = vmatpush1.bf16.msra.mxu0 %v194
  %218 = vmatprep.subr.bf16.mxu0 0
  %219 = vmatpush1.bf16.msra.mxu0 %v195
  %220 = vmatprep.subr.bf16.mxu0 0
  %221 = vmatpush1.bf16.msra.mxu0 0
  %222 = vmatprep.subr.bf16.mxu0 0
  %223 = vmatpush1.bf16.msra.mxu0 0
  %224 = vmatprep.subr.bf16.mxu0 0
  %225 = vmatpush1.bf16.msra.mxu0 0
  %226 = vmatprep.subr.bf16.mxu0 0
  %227 = vmatpush1.bf16.msra.mxu0 0
  %228 = vmatprep.subr.bf16.mxu0 0
  %229 = vmatpush1.bf16.msra.mxu0 0
  %230 = vmatprep.subr.bf16.mxu0 0
  %231 = vmatpush1.bf16.msra.mxu0 0
  %232 = vmatprep.subr.bf16.mxu0 0
  %233 = vmatpush1.bf16.msra.mxu0 0
  %234 = vmatprep.subr.bf16.mxu0 0
  %235 = vmatpush1.bf16.msra.mxu0 0
  %236 = vmatprep.mubr.bf16.mxu0 0
  %237 = vmatmul.mubr.bf16.gmra.mrb[0].mxu0 %v124
  %v238 = vpop.f32.mrb[0].mxu0
  %v239 = vadd.f32 0.0, %v238
  %v240 = vpop.f32.mrb[0].mxu0
  %v241 = vpop.f32.mrb[0].mxu0
  %v242 = vadd.f32 0.0, %v241
  %v243 = vpop.f32.mrb[0].mxu0
  %244 = vmatprep.mubr.bf16.mxu0 0
  %245 = vmatmul.mubr.bf16.gmra.mrb[0].mxu0 %v125
  %v246 = vpop.f32.mrb[0].mxu0
  %v247 = vadd.f32 0.0, %v246
  %v248 = vpop.f32.mrb[0].mxu0
  %v249 = vpop.f32.mrb[0].mxu0
  %v250 = vadd.f32 0.0, %v249
  %v251 = vpop.f32.mrb[0].mxu0
  %252 = vmatprep.mubr.bf16.mxu0 0
  %253 = vmatmul.mubr.bf16.gmra.mrb[0].mxu0 %v126
  %v254 = vpop.f32.mrb[0].mxu0
  %v255 = vadd.f32 0.0, %v254
  %v256 = vpop.f32.mrb[0].mxu0
  %v257 = vpop.f32.mrb[0].mxu0
  %v258 = vadd.f32 0.0, %v257
  %v259 = vpop.f32.mrb[0].mxu0
  %260 = vmatprep.mubr.bf16.mxu0 0
  %261 = vmatmul.mubr.bf16.gmra.mrb[0].mxu0 %v127
  %v262 = vpop.f32.mrb[0].mxu0
  %v263 = vadd.f32 0.0, %v262
  %v264 = vpop.f32.mrb[0].mxu0
  %v265 = vpop.f32.mrb[0].mxu0
  %v266 = vadd.f32 0.0, %v265
  %v267 = vpop.f32.mrb[0].mxu0
  %268 = vmatprep.mubr.bf16.mxu0 0
  %269 = vmatmul.mubr.bf16.gmra.mrb[0].mxu0 %v128
  %v270 = vpop.f32.mrb[0].mxu0
  %v271 = vadd.f32 0.0, %v270
  %v272 = vpop.f32.mrb[0].mxu0
  %v273 = vpop.f32.mrb[0].mxu0
  %v274 = vadd.f32 0.0, %v273
  %v275 = vpop.f32.mrb[0].mxu0
  %276 = vmatprep.mubr.bf16.mxu0 0
  %277 = vmatmul.mubr.bf16.gmra.mrb[0].mxu0 %v129
  %v278 = vpop.f32.mrb[0].mxu0
  %v279 = vadd.f32 0.0, %v278
  %v280 = vpop.f32.mrb[0].mxu0
  %v281 = vpop.f32.mrb[0].mxu0
  %v282 = vadd.f32 0.0, %v281
  %v283 = vpop.f32.mrb[0].mxu0
  %284 = vmatprep.mubr.bf16.mxu0 0
  %285 = vmatmul.mubr.bf16.gmra.mrb[0].mxu0 %v130
  %v286 = vpop.f32.mrb[0].mxu0
  %v287 = vadd.f32 0.0, %v286
  %v288 = vpop.f32.mrb[0].mxu0
  %v289 = vpop.f32.mrb[0].mxu0
  %v290 = vadd.f32 0.0, %v289
  %v291 = vpop.f32.mrb[0].mxu0
  %292 = vmatprep.mubr.bf16.mxu0 0
  %293 = vmatmul.mubr.bf16.gmra.mrb[0].mxu0 %v131
  %v294 = vpop.f32.mrb[0].mxu0
  %v295 = vadd.f32 0.0, %v294
  %v296 = vpop.f32.mrb[0].mxu0
  %v297 = vpop.f32.mrb[0].mxu0
  %v298 = vadd.f32 0.0, %v297
  %v299 = vpop.f32.mrb[0].mxu0
  %300 = vmatprep.mubr.bf16.mxu0 0
  %301 = vmatmul.mubr.bf16.gmra.mrb[0].mxu0 %v132
  %v302 = vpop.f32.mrb[0].mxu0
  %v303 = vadd.f32 0.0, %v302
  %v304 = vpop.f32.mrb[0].mxu0
  %v305 = vpop.f32.mrb[0].mxu0
  %v306 = vadd.f32 0.0, %v305
  %v307 = vpop.f32.mrb[0].mxu0
  %308 = vmatprep.mubr.bf16.mxu0 0
  %309 = vmatmul.mubr.bf16.gmra.mrb[0].mxu0 %v133
  %v310 = vpop.f32.mrb[0].mxu0
  %v311 = vadd.f32 0.0, %v310
  %v312 = vpop.f32.mrb[0].mxu0
  %v313 = vpop.f32.mrb[0].mxu0
  %v314 = vadd.f32 0.0, %v313
  %v315 = vpop.f32.mrb[0].mxu0
  %316 = vmatprep.mubr.bf16.mxu0 0
  %317 = vmatmul.mubr.bf16.gmra.mrb[0].mxu0 %v134
  %v318 = vpop.f32.mrb[0].mxu0
  %v319 = vadd.f32 0.0, %v318
  %v320 = vpop.f32.mrb[0].mxu0
  %v321 = vpop.f32.mrb[0].mxu0
  %v322 = vadd.f32 0.0, %v321
  %v323 = vpop.f32.mrb[0].mxu0
  %324 = vmatprep.mubr.bf16.mxu0 0
  %325 = vmatmul.mubr.bf16.gmra.mrb[0].mxu0 %v135
  %v326 = vpop.f32.mrb[0].mxu0
  %v327 = vadd.f32 0.0, %v326
  %v328 = vpop.f32.mrb[0].mxu0
  %v329 = vpop.f32.mrb[0].mxu0
  %v330 = vadd.f32 0.0, %v329
  %v331 = vpop.f32.mrb[0].mxu0
  %332 = vmatprep.mubr.bf16.mxu0 0
  %333 = vmatmul.mubr.bf16.gmra.mrb[0].mxu0 %v136
  %v334 = vpop.f32.mrb[0].mxu0
  %v335 = vadd.f32 0.0, %v334
  %v336 = vpop.f32.mrb[0].mxu0
  %v337 = vpop.f32.mrb[0].mxu0
  %v338 = vadd.f32 0.0, %v337
  %v339 = vpop.f32.mrb[0].mxu0
  %340 = vmatprep.mubr.bf16.mxu0 0
  %341 = vmatmul.mubr.bf16.gmra.mrb[0].mxu0 %v137
  %v342 = vpop.f32.mrb[0].mxu0
  %v343 = vadd.f32 0.0, %v342
  %v344 = vpop.f32.mrb[0].mxu0
  %v345 = vpop.f32.mrb[0].mxu0
  %v346 = vadd.f32 0.0, %v345
  %v347 = vpop.f32.mrb[0].mxu0
  %348 = vmatprep.mubr.bf16.mxu0 0
  %349 = vmatmul.mubr.bf16.gmra.mrb[0].mxu0 %v138
  %v350 = vpop.f32.mrb[0].mxu0
  %v351 = vadd.f32 0.0, %v350
  %v352 = vpop.f32.mrb[0].mxu0
  %v353 = vpop.f32.mrb[0].mxu0
  %v354 = vadd.f32 0.0, %v353
  %v355 = vpop.f32.mrb[0].mxu0
  %356 = vmatprep.mubr.bf16.mxu0 0
  %357 = vmatmul.mubr.bf16.gmra.mrb[0].mxu0 %v139
  %v358 = vpop.f32.mrb[0].mxu0
  %v359 = vadd.f32 0.0, %v358
  %v360 = vpop.f32.mrb[0].mxu0
  %v361 = vpop.f32.mrb[0].mxu0
  %v362 = vadd.f32 0.0, %v361
  %v363 = vpop.f32.mrb[0].mxu0
  %364 = vdwg.mxu0
  %v365 = vpack.c.bf16 %v242, %v239
  %v366 = vpack.c.bf16 %v250, %v247
  %v367 = vpack.c.bf16 %v258, %v255
  %v368 = vpack.c.bf16 %v266, %v263
  %v369 = vpack.c.bf16 %v274, %v271
  %v370 = vpack.c.bf16 %v282, %v279
  %v371 = vpack.c.bf16 %v290, %v287
  %v372 = vpack.c.bf16 %v298, %v295
  %v373 = vpack.c.bf16 %v306, %v303
  %v374 = vpack.c.bf16 %v314, %v311
  %v375 = vpack.c.bf16 %v322, %v319
  %v376 = vpack.c.bf16 %v330, %v327
  %v377 = vpack.c.bf16 %v338, %v335
  %v378 = vpack.c.bf16 %v346, %v343
  %v379 = vpack.c.bf16 %v354, %v351
  %v380 = vpack.c.bf16 %v362, %v359
  %v397 = vunpack.c.l.b16 %v365
  %v398 = vunpack.c.h.b16 %v365
  %v399 = vunpack.c.l.b16 %v366
  %v400 = vunpack.c.h.b16 %v366
  %v401 = vunpack.c.l.b16 %v367
  %v402 = vunpack.c.h.b16 %v367
  %v403 = vunpack.c.l.b16 %v368
  %v404 = vunpack.c.h.b16 %v368
  %v405 = vunpack.c.l.b16 %v369
  %v406 = vunpack.c.h.b16 %v369
  %v407 = vunpack.c.l.b16 %v370
  %v408 = vunpack.c.h.b16 %v370
  %v409 = vunpack.c.l.b16 %v371
  %v410 = vunpack.c.h.b16 %v371
  %v411 = vunpack.c.l.b16 %v372
  %v412 = vunpack.c.h.b16 %v372
  %v413 = vunpack.c.l.b16 %v373
  %v414 = vunpack.c.h.b16 %v373
  %v415 = vunpack.c.l.b16 %v374
  %v416 = vunpack.c.h.b16 %v374
  %v417 = vunpack.c.l.b16 %v375
  %v418 = vunpack.c.h.b16 %v375
  %v419 = vunpack.c.l.b16 %v376
  %v420 = vunpack.c.h.b16 %v376
  %v421 = vunpack.c.l.b16 %v377
  %v422 = vunpack.c.h.b16 %v377
  %v423 = vunpack.c.l.b16 %v378
  %v424 = vunpack.c.h.b16 %v378
  %v425 = vunpack.c.l.b16 %v379
  %v426 = vunpack.c.h.b16 %v379
  %v427 = vunpack.c.l.b16 %v380
  %v428 = vunpack.c.h.b16 %v380
  %v429 = vpack.c.b16 %v397, %v397
  %v430 = vpack.c.b16 %v398, %v398
  %v431 = vpack.c.b16 %v399, %v399
  %v432 = vpack.c.b16 %v400, %v400
  %v433 = vpack.c.b16 %v401, %v401
  %v434 = vpack.c.b16 %v402, %v402
  %v435 = vpack.c.b16 %v403, %v403
  %v436 = vpack.c.b16 %v404, %v404
  %v437 = vpack.c.b16 %v405, %v405
  %v438 = vpack.c.b16 %v406, %v406
  %v439 = vpack.c.b16 %v407, %v407
  %v440 = vpack.c.b16 %v408, %v408
  %v441 = vpack.c.b16 %v409, %v409
  %v442 = vpack.c.b16 %v410, %v410
  %v443 = vpack.c.b16 %v411, %v411
  %v444 = vpack.c.b16 %v412, %v412
  %v445 = vpack.c.b16 %v413, %v413
  %v446 = vpack.c.b16 %v414, %v414
  %v447 = vpack.c.b16 %v415, %v415
  %v448 = vpack.c.b16 %v416, %v416
  %v449 = vpack.c.b16 %v417, %v417
  %v450 = vpack.c.b16 %v418, %v418
  %v451 = vpack.c.b16 %v419, %v419
  %v452 = vpack.c.b16 %v420, %v420
  %v453 = vpack.c.b16 %v421, %v421
  %v454 = vpack.c.b16 %v422, %v422
  %v455 = vpack.c.b16 %v423, %v423
  %v456 = vpack.c.b16 %v424, %v424
  %v457 = vpack.c.b16 %v425, %v425
  %v458 = vpack.c.b16 %v426, %v426
  %v459 = vpack.c.b16 %v427, %v427
  %v460 = vpack.c.b16 %v428, %v428
  %493 = vst [vmem:[%s2] sm:$0xf] %v429
  %494 = vst [vmem:[%s2 + $0x4] sm:$0xf] %v430
  %495 = vst [vmem:[%s2 + $0x8] sm:$0xf] %v431
  %496 = vst [vmem:[%s2 + $0xc] sm:$0xf] %v432
  %497 = vst [vmem:[%s2 + $0x10] sm:$0xf] %v433
  %498 = vst [vmem:[%s2 + $0x14] sm:$0xf] %v434
  %499 = vst [vmem:[%s2 + $0x18] sm:$0xf] %v435
  %500 = vst [vmem:[%s2 + $0x1c] sm:$0xf] %v436
  %501 = vst [vmem:[%s2 + $0x20] sm:$0xf] %v437
  %502 = vst [vmem:[%s2 + $0x24] sm:$0xf] %v438
  %503 = vst [vmem:[%s2 + $0x28] sm:$0xf] %v439
  %504 = vst [vmem:[%s2 + $0x2c] sm:$0xf] %v440
  %505 = vst [vmem:[%s2 + $0x30] sm:$0xf] %v441
  %506 = vst [vmem:[%s2 + $0x34] sm:$0xf] %v442
  %507 = vst [vmem:[%s2 + $0x38] sm:$0xf] %v443
  %508 = vst [vmem:[%s2 + $0x3c] sm:$0xf] %v444
  %509 = vst [vmem:[%s2 + $0x40] sm:$0xf] %v445
  %510 = vst [vmem:[%s2 + $0x44] sm:$0xf] %v446
  %511 = vst [vmem:[%s2 + $0x48] sm:$0xf] %v447
  %512 = vst [vmem:[%s2 + $0x4c] sm:$0xf] %v448
  %513 = vst [vmem:[%s2 + $0x50] sm:$0xf] %v449
  %514 = vst [vmem:[%s2 + $0x54] sm:$0xf] %v450
  %515 = vst [vmem:[%s2 + $0x58] sm:$0xf] %v451
  %516 = vst [vmem:[%s2 + $0x5c] sm:$0xf] %v452
  %517 = vst [vmem:[%s2 + $0x60] sm:$0xf] %v453
  %518 = vst [vmem:[%s2 + $0x64] sm:$0xf] %v454
  %519 = vst [vmem:[%s2 + $0x68] sm:$0xf] %v455
  %520 = vst [vmem:[%s2 + $0x6c] sm:$0xf] %v456
  %521 = vst [vmem:[%s2 + $0x70] sm:$0xf] %v457
  %522 = vst [vmem:[%s2 + $0x74] sm:$0xf] %v458
  %523 = vst [vmem:[%s2 + $0x78] sm:$0xf] %v459
  %524 = vst [vmem:[%s2 + $0x7c] sm:$0xf] %v460
  // Predicated region
  $region10: #{gnn_forward.3} parent=0 // pred_check
    _
  $region11: #{gnn_forward.3} parent=0 // pred_check_branch
    %526 = sbr.rel (0) target = $region13
  $region12: #{gnn_forward.3} parent=0 // pred_region
    _
  $region13: #{gnn_forward.3} parent=0 // pred_fallthru
    _
  // Predicated region
  $region14: #{gnn_forward.3} parent=0 // pred_check
    _
  $region15: #{gnn_forward.3} parent=0 // pred_check_branch
    %528 = sbr.rel (0) target = $region17
  $region16: #{gnn_forward.3} parent=0 // pred_region
    _
  $region17: #{gnn_forward.3} parent=0 // pred_fallthru
    _

// kernel: gnn_forward.5
$region0: #{gnn_forward.5}
  #allocation0 [shape = 'u32[]', space=smem, size = 0x4, offset = 0x4, fixed_abs, tag = 'smem constant byte address 0x4 - core index']
  #allocation1 [shape = 'u32[144,128]{1,0:T(1,128)}', space=vmem, size = 0x12000, scoped, tag = 'internal scratch']
  #allocation2 [shape = 'f32[256,128]{1,0:T(8,128)}', space=vmem, size = 0x20000, scoped, tag = 'scratch operand']
  %s0 = inlined_call_operand.vmem [shape: bf16[256,256], index: 0, kind: input, shape index: {}]
  %s1 = inlined_call_operand.vmem [shape: bf16[256,128], index: 1, kind: input, shape index: {}]
  %s2 = inlined_call_operand.vmem [shape: f32[1,128], index: 2, kind: input, shape index: {}]
  %s3 = inlined_call_operand.vmem [shape: bf16[128,128], index: 3, kind: input, shape index: {}]
  %s4 = inlined_call_operand.vmem [shape: f32[1,128], index: 4, kind: input, shape index: {}]
  %s5 = inlined_call_operand.vmem [shape: f32[256,128], index: 5, kind: output, shape index: {}]
  %s6 = sld [smem:[#allocation0]]
  $region38: #{gnn_forward.5} parent=0
    _
  %s8 = ssub.s32 1, %s6
  %s9 = scalar_select 0, %s8, %s6
  // Predicated region
  $region2: #{gnn_forward.5} parent=0 // pred_check
    _
  $region3: #{gnn_forward.5} parent=0 // pred_check_branch
    %11 = sbr.rel (0) target = $region5
  $region4: #{gnn_forward.5} parent=0 // pred_region
    _
  $region5: #{gnn_forward.5} parent=0 // pred_fallthru
    _
  // Predicated region
  $region6: #{gnn_forward.5} parent=0 // pred_check
    _
  $region7: #{gnn_forward.5} parent=0 // pred_check_branch
    %13 = sbr.rel (0) target = $region9
  $region8: #{gnn_forward.5} parent=0 // pred_region
    _
  $region9: #{gnn_forward.5} parent=0 // pred_fallthru
    _
  // Predicated region
  $region10: #{gnn_forward.5} parent=0 // pred_check
    _
  $region11: #{gnn_forward.5} parent=0 // pred_check_branch
    %15 = sbr.rel (0) target = $region13
  $region12: #{gnn_forward.5} parent=0 // pred_region
    _
  $region13: #{gnn_forward.5} parent=0 // pred_fallthru
    _
  // Predicated region
  $region14: #{gnn_forward.5} parent=0 // pred_check
    _
  $region15: #{gnn_forward.5} parent=0 // pred_check_branch
    %17 = sbr.rel (0) target = $region17
  $region16: #{gnn_forward.5} parent=0 // pred_region
    _
  $region17: #{gnn_forward.5} parent=0 // pred_fallthru
    _
  // Predicated region
  $region18: #{gnn_forward.5} parent=0 // pred_check
    _
  $region19: #{gnn_forward.5} parent=0 // pred_check_branch
    %19 = sbr.rel (0) target = $region21
  $region20: #{gnn_forward.5} parent=0 // pred_region
    _
  $region21: #{gnn_forward.5} parent=0 // pred_fallthru
    _
  %p21 = scmp.eq.s32.totalorder 0, 0
  // Predicated region
  $region22: #{gnn_forward.5} parent=0 // pred_check
    %p22 = pneg %p21
  $region23: #{gnn_forward.5} parent=0 // pred_check_branch
    %24 = sbr.rel (%p22) target = $region25
  $region24: #{gnn_forward.5} parent=0 // pred_region
    %25 = vst [vmem:[#allocation2] sm:$0xff] 0.0
    %26 = vst [vmem:[#allocation2 + $0x8] sm:$0xff] 0.0
    %27 = vst [vmem:[#allocation2 + $0x10] sm:$0xff] 0.0
    %28 = vst [vmem:[#allocation2 + $0x18] sm:$0xff] 0.0
    %29 = vst [vmem:[#allocation2 + $0x20] sm:$0xff] 0.0
    %30 = vst [vmem:[#allocation2 + $0x28] sm:$0xff] 0.0
    %31 = vst [vmem:[#allocation2 + $0x30] sm:$0xff] 0.0
    %32 = vst [vmem:[#allocation2 + $0x38] sm:$0xff] 0.0
    %33 = vst [vmem:[#allocation2 + $0x40] sm:$0xff] 0.0
    %34 = vst [vmem:[#allocation2 + $0x48] sm:$0xff] 0.0
    %35 = vst [vmem:[#allocation2 + $0x50] sm:$0xff] 0.0
    %36 = vst [vmem:[#allocation2 + $0x58] sm:$0xff] 0.0
    %37 = vst [vmem:[#allocation2 + $0x60] sm:$0xff] 0.0
    %38 = vst [vmem:[#allocation2 + $0x68] sm:$0xff] 0.0
    %39 = vst [vmem:[#allocation2 + $0x70] sm:$0xff] 0.0
    %40 = vst [vmem:[#allocation2 + $0x78] sm:$0xff] 0.0
    %41 = vst [vmem:[#allocation2 + $0x80] sm:$0xff] 0.0
    %42 = vst [vmem:[#allocation2 + $0x88] sm:$0xff] 0.0
    %43 = vst [vmem:[#allocation2 + $0x90] sm:$0xff] 0.0
    %44 = vst [vmem:[#allocation2 + $0x98] sm:$0xff] 0.0
    %45 = vst [vmem:[#allocation2 + $0xa0] sm:$0xff] 0.0
    %46 = vst [vmem:[#allocation2 + $0xa8] sm:$0xff] 0.0
    %47 = vst [vmem:[#allocation2 + $0xb0] sm:$0xff] 0.0
    %48 = vst [vmem:[#allocation2 + $0xb8] sm:$0xff] 0.0
    %49 = vst [vmem:[#allocation2 + $0xc0] sm:$0xff] 0.0
    %50 = vst [vmem:[#allocation2 + $0xc8] sm:$0xff] 0.0
    %51 = vst [vmem:[#allocation2 + $0xd0] sm:$0xff] 0.0
    %52 = vst [vmem:[#allocation2 + $0xd8] sm:$0xff] 0.0
    %53 = vst [vmem:[#allocation2 + $0xe0] sm:$0xff] 0.0
    %54 = vst [vmem:[#allocation2 + $0xe8] sm:$0xff] 0.0
    %55 = vst [vmem:[#allocation2 + $0xf0] sm:$0xff] 0.0
    %56 = vst [vmem:[#allocation2 + $0xf8] sm:$0xff] 0.0
  $region25: #{gnn_forward.5} parent=0 // pred_fallthru
    _
  %v57 = vld [vmem:[#allocation2] sm:$0xff]
  %v58 = vld [vmem:[#allocation2 + $0x8] sm:$0xff]
  %v59 = vld [vmem:[#allocation2 + $0x10] sm:$0xff]
  %v60 = vld [vmem:[#allocation2 + $0x18] sm:$0xff]
  %v61 = vld [vmem:[#allocation2 + $0x20] sm:$0xff]
  %v62 = vld [vmem:[#allocation2 + $0x28] sm:$0xff]
  %v63 = vld [vmem:[#allocation2 + $0x30] sm:$0xff]
  %v64 = vld [vmem:[#allocation2 + $0x38] sm:$0xff]
  %v65 = vld [vmem:[#allocation2 + $0x40] sm:$0xff]
  %v66 = vld [vmem:[#allocation2 + $0x48] sm:$0xff]
  %v67 = vld [vmem:[#allocation2 + $0x50] sm:$0xff]
  %v68 = vld [vmem:[#allocation2 + $0x58] sm:$0xff]
  %v69 = vld [vmem:[#allocation2 + $0x60] sm:$0xff]
  %v70 = vld [vmem:[#allocation2 + $0x68] sm:$0xff]
  %v71 = vld [vmem:[#allocation2 + $0x70] sm:$0xff]
  %v72 = vld [vmem:[#allocation2 + $0x78] sm:$0xff]
  %v73 = vld [vmem:[#allocation2 + $0x80] sm:$0xff]
  %v74 = vld [vmem:[#allocation2 + $0x88] sm:$0xff]
  %v75 = vld [vmem:[#allocation2 + $0x90] sm:$0xff]
  %v76 = vld [vmem:[#allocation2 + $0x98] sm:$0xff]
  %v77 = vld [vmem:[#allocation2 + $0xa0] sm:$0xff]
  %v78 = vld [vmem:[#allocation2 + $0xa8] sm:$0xff]
  %v79 = vld [vmem:[#allocation2 + $0xb0] sm:$0xff]
  %v80 = vld [vmem:[#allocation2 + $0xb8] sm:$0xff]
  %v81 = vld [vmem:[#allocation2 + $0xc0] sm:$0xff]
  %v82 = vld [vmem:[#allocation2 + $0xc8] sm:$0xff]
  %v83 = vld [vmem:[#allocation2 + $0xd0] sm:$0xff]
  %v84 = vld [vmem:[#allocation2 + $0xd8] sm:$0xff]
  %v85 = vld [vmem:[#allocation2 + $0xe0] sm:$0xff]
  %v86 = vld [vmem:[#allocation2 + $0xe8] sm:$0xff]
  %v87 = vld [vmem:[#allocation2 + $0xf0] sm:$0xff]
  %v88 = vld [vmem:[#allocation2 + $0xf8] sm:$0xff]
  %v89 = vld [vmem:[%s0] sm:$0xff]
  %v90 = vld [vmem:[%s0 + $0x8] sm:$0xff]
  %v91 = vld [vmem:[%s0 + $0x10] sm:$0xff]
  %v92 = vld [vmem:[%s0 + $0x18] sm:$0xff]
  %v93 = vld [vmem:[%s0 + $0x20] sm:$0xff]
  %v94 = vld [vmem:[%s0 + $0x28] sm:$0xff]
  %v95 = vld [vmem:[%s0 + $0x30] sm:$0xff]
  %v96 = vld [vmem:[%s0 + $0x38] sm:$0xff]
  %v97 = vld [vmem:[%s0 + $0x40] sm:$0xff]
  %v98 = vld [vmem:[%s0 + $0x48] sm:$0xff]
  %v99 = vld [vmem:[%s0 + $0x50] sm:$0xff]
  %v100 = vld [vmem:[%s0 + $0x58] sm:$0xff]
  %v101 = vld [vmem:[%s0 + $0x60] sm:$0xff]
  %v102 = vld [vmem:[%s0 + $0x68] sm:$0xff]
  %v103 = vld [vmem:[%s0 + $0x70] sm:$0xff]
  %v104 = vld [vmem:[%s0 + $0x78] sm:$0xff]
  %v105 = vld [vmem:[%s0 + $0x80] sm:$0xff]
  %v106 = vld [vmem:[%s0 + $0x88] sm:$0xff]
  %v107 = vld [vmem:[%s0 + $0x90] sm:$0xff]
  %v108 = vld [vmem:[%s0 + $0x98] sm:$0xff]
  %v109 = vld [vmem:[%s0 + $0xa0] sm:$0xff]
  %v110 = vld [vmem:[%s0 + $0xa8] sm:$0xff]
  %v111 = vld [vmem:[%s0 + $0xb0] sm:$0xff]
  %v112 = vld [vmem:[%s0 + $0xb8] sm:$0xff]
  %v113 = vld [vmem:[%s0 + $0xc0] sm:$0xff]
  %v114 = vld [vmem:[%s0 + $0xc8] sm:$0xff]
  %v115 = vld [vmem:[%s0 + $0xd0] sm:$0xff]
  %v116 = vld [vmem:[%s0 + $0xd8] sm:$0xff]
  %v117 = vld [vmem:[%s0 + $0xe0] sm:$0xff]
  %v118 = vld [vmem:[%s0 + $0xe8] sm:$0xff]
  %v119 = vld [vmem:[%s0 + $0xf0] sm:$0xff]
  %v120 = vld [vmem:[%s0 + $0xf8] sm:$0xff]
  %v121 = vld [vmem:[%s1] sm:$0xf]
  %v122 = vld [vmem:[%s1 + $0x4] sm:$0xf]
  %v123 = vld [vmem:[%s1 + $0x8] sm:$0xf]
  %v124 = vld [vmem:[%s1 + $0xc] sm:$0xf]
  %v125 = vld [vmem:[%s1 + $0x10] sm:$0xf]
  %v126 = vld [vmem:[%s1 + $0x14] sm:$0xf]
  %v127 = vld [vmem:[%s1 + $0x18] sm:$0xf]
  %v128 = vld [vmem:[%s1 + $0x1c] sm:$0xf]
  %v129 = vld [vmem:[%s1 + $0x20] sm:$0xf]
  %v130 = vld [vmem:[%s1 + $0x24] sm:$0xf]
  %v131 = vld [vmem:[%s1 + $0x28] sm:$0xf]
  %v132 = vld [vmem:[%s1 + $0x2c] sm:$0xf]
  %v133 = vld [vmem:[%s1 + $0x30] sm:$0xf]
  %v134 = vld [vmem:[%s1 + $0x34] sm:$0xf]
  %v135 = vld [vmem:[%s1 + $0x38] sm:$0xf]
  %v136 = vld [vmem:[%s1 + $0x3c] sm:$0xf]
  %v137 = vld [vmem:[%s1 + $0x40] sm:$0xf]
  %v138 = vld [vmem:[%s1 + $0x44] sm:$0xf]
  %v139 = vld [vmem:[%s1 + $0x48] sm:$0xf]
  %v140 = vld [vmem:[%s1 + $0x4c] sm:$0xf]
  %v141 = vld [vmem:[%s1 + $0x50] sm:$0xf]
  %v142 = vld [vmem:[%s1 + $0x54] sm:$0xf]
  %v143 = vld [vmem:[%s1 + $0x58] sm:$0xf]
  %v144 = vld [vmem:[%s1 + $0x5c] sm:$0xf]
  %v145 = vld [vmem:[%s1 + $0x60] sm:$0xf]
  %v146 = vld [vmem:[%s1 + $0x64] sm:$0xf]
  %v147 = vld [vmem:[%s1 + $0x68] sm:$0xf]
  %v148 = vld [vmem:[%s1 + $0x6c] sm:$0xf]
  %v149 = vld [vmem:[%s1 + $0x70] sm:$0xf]
  %v150 = vld [vmem:[%s1 + $0x74] sm:$0xf]
  %v151 = vld [vmem:[%s1 + $0x78] sm:$0xf]
  %v152 = vld [vmem:[%s1 + $0x7c] sm:$0xf]
  %v185 = vunpack.c.l.b16 %v89
  %v186 = vunpack.c.h.b16 %v89
  %v187 = vunpack.c.l.b16 %v90
  %v188 = vunpack.c.h.b16 %v90
  %v189 = vunpack.c.l.b16 %v91
  %v190 = vunpack.c.h.b16 %v91
  %v191 = vunpack.c.l.b16 %v92
  %v192 = vunpack.c.h.b16 %v92
  %v193 = vunpack.c.l.b16 %v93
  %v194 = vunpack.c.h.b16 %v93
  %v195 = vunpack.c.l.b16 %v94
  %v196 = vunpack.c.h.b16 %v94
  %v197 = vunpack.c.l.b16 %v95
  %v198 = vunpack.c.h.b16 %v95
  %v199 = vunpack.c.l.b16 %v96
  %v200 = vunpack.c.h.b16 %v96
  %v201 = vunpack.c.l.b16 %v97
  %v202 = vunpack.c.h.b16 %v97
  %v203 = vunpack.c.l.b16 %v98
  %v204 = vunpack.c.h.b16 %v98
  %v205 = vunpack.c.l.b16 %v99
  %v206 = vunpack.c.h.b16 %v99
  %v207 = vunpack.c.l.b16 %v100
  %v208 = vunpack.c.h.b16 %v100
  %v209 = vunpack.c.l.b16 %v101
  %v210 = vunpack.c.h.b16 %v101
  %v211 = vunpack.c.l.b16 %v102
  %v212 = vunpack.c.h.b16 %v102
  %v213 = vunpack.c.l.b16 %v103
  %v214 = vunpack.c.h.b16 %v103
  %v215 = vunpack.c.l.b16 %v104
  %v216 = vunpack.c.h.b16 %v104
  %v217 = vunpack.c.l.b16 %v105
  %v218 = vunpack.c.h.b16 %v105
  %v219 = vunpack.c.l.b16 %v106
  %v220 = vunpack.c.h.b16 %v106
  %v221 = vunpack.c.l.b16 %v107
  %v222 = vunpack.c.h.b16 %v107
  %v223 = vunpack.c.l.b16 %v108
  %v224 = vunpack.c.h.b16 %v108
  %v225 = vunpack.c.l.b16 %v109
  %v226 = vunpack.c.h.b16 %v109
  %v227 = vunpack.c.l.b16 %v110
  %v228 = vunpack.c.h.b16 %v110
  %v229 = vunpack.c.l.b16 %v111
  %v230 = vunpack.c.h.b16 %v111
  %v231 = vunpack.c.l.b16 %v112
  %v232 = vunpack.c.h.b16 %v112
  %v233 = vunpack.c.l.b16 %v113
  %v234 = vunpack.c.h.b16 %v113
  %v235 = vunpack.c.l.b16 %v114
  %v236 = vunpack.c.h.b16 %v114
  %v237 = vunpack.c.l.b16 %v115
  %v238 = vunpack.c.h.b16 %v115
  %v239 = vunpack.c.l.b16 %v116
  %v240 = vunpack.c.h.b16 %v116
  %v241 = vunpack.c.l.b16 %v117
  %v242 = vunpack.c.h.b16 %v117
  %v243 = vunpack.c.l.b16 %v118
  %v244 = vunpack.c.h.b16 %v118
  %v245 = vunpack.c.l.b16 %v119
  %v246 = vunpack.c.h.b16 %v119
  %v247 = vunpack.c.l.b16 %v120
  %v248 = vunpack.c.h.b16 %v120
  %v249 = vpack.c.b16 %v187, %v185
  %v250 = vpack.c.b16 %v188, %v186
  %v251 = vpack.c.b16 %v191, %v189
  %v252 = vpack.c.b16 %v192, %v190
  %v253 = vpack.c.b16 %v195, %v193
  %v254 = vpack.c.b16 %v196, %v194
  %v255 = vpack.c.b16 %v199, %v197
  %v256 = vpack.c.b16 %v200, %v198
  %v257 = vpack.c.b16 %v203, %v201
  %v258 = vpack.c.b16 %v204, %v202
  %v259 = vpack.c.b16 %v207, %v205
  %v260 = vpack.c.b16 %v208, %v206
  %v261 = vpack.c.b16 %v211, %v209
  %v262 = vpack.c.b16 %v212, %v210
  %v263 = vpack.c.b16 %v215, %v213
  %v264 = vpack.c.b16 %v216, %v214
  %v265 = vpack.c.b16 %v219, %v217
  %v266 = vpack.c.b16 %v220, %v218
  %v267 = vpack.c.b16 %v223, %v221
  %v268 = vpack.c.b16 %v224, %v222
  %v269 = vpack.c.b16 %v227, %v225
  %v270 = vpack.c.b16 %v228, %v226
  %v271 = vpack.c.b16 %v231, %v229
  %v272 = vpack.c.b16 %v232, %v230
  %v273 = vpack.c.b16 %v235, %v233
  %v274 = vpack.c.b16 %v236, %v234
  %v275 = vpack.c.b16 %v239, %v237
  %v276 = vpack.c.b16 %v240, %v238
  %v277 = vpack.c.b16 %v243, %v241
  %v278 = vpack.c.b16 %v244, %v242
  %v279 = vpack.c.b16 %v247, %v245
  %v280 = vpack.c.b16 %v248, %v246
  %v345 = vunpack.c.l.b16 %v121
  %v346 = vunpack.c.l.b16 %v122
  %v347 = vunpack.c.l.b16 %v123
  %v348 = vunpack.c.l.b16 %v124
  %v349 = vunpack.c.l.b16 %v125
  %v350 = vunpack.c.l.b16 %v126
  %v351 = vunpack.c.l.b16 %v127
  %v352 = vunpack.c.l.b16 %v128
  %v353 = vunpack.c.l.b16 %v129
  %v354 = vunpack.c.l.b16 %v130
  %v355 = vunpack.c.l.b16 %v131
  %v356 = vunpack.c.l.b16 %v132
  %v357 = vunpack.c.l.b16 %v133
  %v358 = vunpack.c.l.b16 %v134
  %v359 = vunpack.c.l.b16 %v135
  %v360 = vunpack.c.l.b16 %v136
  %v361 = vunpack.c.l.b16 %v137
  %v362 = vunpack.c.l.b16 %v138
  %v363 = vunpack.c.l.b16 %v139
  %v364 = vunpack.c.l.b16 %v140
  %v365 = vunpack.c.l.b16 %v141
  %v366 = vunpack.c.l.b16 %v142
  %v367 = vunpack.c.l.b16 %v143
  %v368 = vunpack.c.l.b16 %v144
  %v369 = vunpack.c.l.b16 %v145
  %v370 = vunpack.c.l.b16 %v146
  %v371 = vunpack.c.l.b16 %v147
  %v372 = vunpack.c.l.b16 %v148
  %v373 = vunpack.c.l.b16 %v149
  %v374 = vunpack.c.l.b16 %v150
  %v375 = vunpack.c.l.b16 %v151
  %v376 = vunpack.c.l.b16 %v152
  %v377 = vpack.c.b16 %v346, %v345
  %v378 = vpack.c.b16 %v348, %v347
  %v379 = vpack.c.b16 %v350, %v349
  %v380 = vpack.c.b16 %v352, %v351
  %v381 = vpack.c.b16 %v354, %v353
  %v382 = vpack.c.b16 %v356, %v355
  %v383 = vpack.c.b16 %v358, %v357
  %v384 = vpack.c.b16 %v360, %v359
  %v385 = vpack.c.b16 %v362, %v361
  %v386 = vpack.c.b16 %v364, %v363
  %v387 = vpack.c.b16 %v366, %v365
  %v388 = vpack.c.b16 %v368, %v367
  %v389 = vpack.c.b16 %v370, %v369
  %v390 = vpack.c.b16 %v372, %v371
  %v391 = vpack.c.b16 %v374, %v373
  %v392 = vpack.c.b16 %v376, %v375
  %409 = vmatprep.subr.bf16.mxu0 0
  %410 = vmatpush1.bf16.msra.mxu0 %v377
  %411 = vmatprep.subr.bf16.mxu0 0
  %412 = vmatpush1.bf16.msra.mxu0 %v378
  %413 = vmatprep.subr.bf16.mxu0 0
  %414 = vmatpush1.bf16.msra.mxu0 %v379
  %415 = vmatprep.subr.bf16.mxu0 0
  %416 = vmatpush1.bf16.msra.mxu0 %v380
  %417 = vmatprep.subr.bf16.mxu0 0
  %418 = vmatpush1.bf16.msra.mxu0 %v381
  %419 = vmatprep.subr.bf16.mxu0 0
  %420 = vmatpush1.bf16.msra.mxu0 %v382
  %421 = vmatprep.subr.bf16.mxu0 0
  %422 = vmatpush1.bf16.msra.mxu0 %v383
  %423 = vmatprep.subr.bf16.mxu0 0
  %424 = vmatpush1.bf16.msra.mxu0 %v384
  %425 = vmatprep.subr.bf16.mxu0 0
  %426 = vmatpush1.bf16.msra.mxu0 %v385
  %427 = vmatprep.subr.bf16.mxu0 0
  %428 = vmatpush1.bf16.msra.mxu0 %v386
  %429 = vmatprep.subr.bf16.mxu0 0
  %430 = vmatpush1.bf16.msra.mxu0 %v387
  %431 = vmatprep.subr.bf16.mxu0 0
  %432 = vmatpush1.bf16.msra.mxu0 %v388
  %433 = vmatprep.subr.bf16.mxu0 0
  %434 = vmatpush1.bf16.msra.mxu0 %v389
  %435 = vmatprep.subr.bf16.mxu0 0
  %436 = vmatpush1.bf16.msra.mxu0 %v390
  %437 = vmatprep.subr.bf16.mxu0 0
  %438 = vmatpush1.bf16.msra.mxu0 %v391
  %439 = vmatprep.subr.bf16.mxu0 0
  %440 = vmatpush1.bf16.msra.mxu0 %v392
  %441 = vmatprep.mubr.bf16.mxu0 %v250
  %442 = vmatmul.mubr.bf16.gmra.mrb[0].mxu0 %v249
  %v443 = vpop.f32.mrb[0].mxu0
  %v444 = vadd.f32 0.0, %v443
  %v445 = vpop.f32.mrb[0].mxu0
  %v446 = vpop.f32.mrb[0].mxu0
  %v447 = vadd.f32 0.0, %v446
  %v448 = vpop.f32.mrb[0].mxu0
  %449 = vmatprep.mubr.bf16.mxu0 %v252
  %450 = vmatmul.mubr.bf16.gmra.mrb[0].mxu0 %v251
  %v451 = vpop.f32.mrb[0].mxu0
  %v452 = vadd.f32 0.0, %v451
  %v453 = vpop.f32.mrb[0].mxu0
  %v454 = vpop.f32.mrb[0].mxu0
  %v455 = vadd.f32 0.0, %v454
  %v456 = vpop.f32.mrb[0].mxu0
  %457 = vmatprep.mubr.bf16.mxu0 %v254
  %458 = vmatmul.mubr.bf16.gmra.mrb[0].mxu0 %v253
  %v459 = vpop.f32.mrb[0].mxu0
  %v460 = vadd.f32 0.0, %v459
  %v461 = vpop.f32.mrb[0].mxu0
  %v462 = vpop.f32.mrb[0].mxu0
  %v463 = vadd.f32 0.0, %v462
  %v464 = vpop.f32.mrb[0].mxu0
  %465 = vmatprep.mubr.bf16.mxu0 %v256
  %466 = vmatmul.mubr.bf16.gmra.mrb[0].mxu0 %v255
  %v467 = vpop.f32.mrb[0].mxu0
  %v468 = vadd.f32 0.0, %v467
  %v469 = vpop.f32.mrb[0].mxu0
  %v470 = vpop.f32.mrb[0].mxu0
  %v471 = vadd.f32 0.0, %v470
  %v472 = vpop.f32.mrb[0].mxu0
  %473 = vmatprep.mubr.bf16.mxu0 %v258
  %474 = vmatmul.mubr.bf16.gmra.mrb[0].mxu0 %v257
  %v475 = vpop.f32.mrb[0].mxu0
  %v476 = vadd.f32 0.0, %v475
  %v477 = vpop.f32.mrb[0].mxu0
  %v478 = vpop.f32.mrb[0].mxu0
  %v479 = vadd.f32 0.0, %v478
  %v480 = vpop.f32.mrb[0].mxu0
  %481 = vmatprep.mubr.bf16.mxu0 %v260
  %482 = vmatmul.mubr.bf16.gmra.mrb[0].mxu0 %v259
  %v483 = vpop.f32.mrb[0].mxu0
  %v484 = vadd.f32 0.0, %v483
  %v485 = vpop.f32.mrb[0].mxu0
  %v486 = vpop.f32.mrb[0].mxu0
  %v487 = vadd.f32 0.0, %v486
  %v488 = vpop.f32.mrb[0].mxu0
  %489 = vmatprep.mubr.bf16.mxu0 %v262
  %490 = vmatmul.mubr.bf16.gmra.mrb[0].mxu0 %v261
  %v491 = vpop.f32.mrb[0].mxu0
  %v492 = vadd.f32 0.0, %v491
  %v493 = vpop.f32.mrb[0].mxu0
  %v494 = vpop.f32.mrb[0].mxu0
  %v495 = vadd.f32 0.0, %v494
  %v496 = vpop.f32.mrb[0].mxu0
  %497 = vmatprep.mubr.bf16.mxu0 %v264
  %498 = vmatmul.mubr.bf16.gmra.mrb[0].mxu0 %v263
  %v499 = vpop.f32.mrb[0].mxu0
  %v500 = vadd.f32 0.0, %v499
  %v501 = vpop.f32.mrb[0].mxu0
  %v502 = vpop.f32.mrb[0].mxu0
  %v503 = vadd.f32 0.0, %v502
  %v504 = vpop.f32.mrb[0].mxu0
  %505 = vmatprep.mubr.bf16.mxu0 %v266
  %506 = vmatmul.mubr.bf16.gmra.mrb[0].mxu0 %v265
  %v507 = vpop.f32.mrb[0].mxu0
  %v508 = vadd.f32 0.0, %v507
  %v509 = vpop.f32.mrb[0].mxu0
  %v510 = vpop.f32.mrb[0].mxu0
  %v511 = vadd.f32 0.0, %v510
  %v512 = vpop.f32.mrb[0].mxu0
  %513 = vmatprep.mubr.bf16.mxu0 %v268
  %514 = vmatmul.mubr.bf16.gmra.mrb[0].mxu0 %v267
  %v515 = vpop.f32.mrb[0].mxu0
  %v516 = vadd.f32 0.0, %v515
  %v517 = vpop.f32.mrb[0].mxu0
  %v518 = vpop.f32.mrb[0].mxu0
  %v519 = vadd.f32 0.0, %v518
  %v520 = vpop.f32.mrb[0].mxu0
  %521 = vmatprep.mubr.bf16.mxu0 %v270
  %522 = vmatmul.mubr.bf16.gmra.mrb[0].mxu0 %v269
  %v523 = vpop.f32.mrb[0].mxu0
  %v524 = vadd.f32 0.0, %v523
  %v525 = vpop.f32.mrb[0].mxu0
  %v526 = vpop.f32.mrb[0].mxu0
  %v527 = vadd.f32 0.0, %v526
  %v528 = vpop.f32.mrb[0].mxu0
  %529 = vmatprep.mubr.bf16.mxu0 %v272
  %530 = vmatmul.mubr.bf16.gmra.mrb[0].mxu0 %v271
  %v531 = vpop.f32.mrb[0].mxu0
  %v532 = vadd.f32 0.0, %v531
  %v533 = vpop.f32.mrb[0].mxu0
  %v534 = vpop.f32.mrb[0].mxu0
  %v535 = vadd.f32 0.0, %v534
  %v536 = vpop.f32.mrb[0].mxu0
  %537 = vmatprep.mubr.bf16.mxu0 %v274
  %538 = vmatmul.mubr.bf16.gmra.mrb[0].mxu0 %v273
  %v539 = vpop.f32.mrb[0].mxu0
  %v540 = vadd.f32 0.0, %v539
  %v541 = vpop.f32.mrb[0].mxu0
  %v542 = vpop.f32.mrb[0].mxu0
  %v543 = vadd.f32 0.0, %v542
  %v544 = vpop.f32.mrb[0].mxu0
  %545 = vmatprep.mubr.bf16.mxu0 %v276
  %546 = vmatmul.mubr.bf16.gmra.mrb[0].mxu0 %v275
  %v547 = vpop.f32.mrb[0].mxu0
  %v548 = vadd.f32 0.0, %v547
  %v549 = vpop.f32.mrb[0].mxu0
  %v550 = vpop.f32.mrb[0].mxu0
  %v551 = vadd.f32 0.0, %v550
  %v552 = vpop.f32.mrb[0].mxu0
  %553 = vmatprep.mubr.bf16.mxu0 %v278
  %554 = vmatmul.mubr.bf16.gmra.mrb[0].mxu0 %v277
  %v555 = vpop.f32.mrb[0].mxu0
  %v556 = vadd.f32 0.0, %v555
  %v557 = vpop.f32.mrb[0].mxu0
  %v558 = vpop.f32.mrb[0].mxu0
  %v559 = vadd.f32 0.0, %v558
  %v560 = vpop.f32.mrb[0].mxu0
  %561 = vmatprep.mubr.bf16.mxu0 %v280
  %562 = vmatmul.mubr.bf16.gmra.mrb[0].mxu0 %v279
  %v563 = vpop.f32.mrb[0].mxu0
  %v564 = vadd.f32 0.0, %v563
  %v565 = vpop.f32.mrb[0].mxu0
  %v566 = vpop.f32.mrb[0].mxu0
  %v567 = vadd.f32 0.0, %v566
  %v568 = vpop.f32.mrb[0].mxu0
  %569 = vdwg.mxu0
  %v570 = vadd.f32 %v57, %v444
  %v571 = vadd.f32 %v58, %v447
  %v572 = vadd.f32 %v59, %v452
  %v573 = vadd.f32 %v60, %v455
  %v574 = vadd.f32 %v61, %v460
  %v575 = vadd.f32 %v62, %v463
  %v576 = vadd.f32 %v63, %v468
  %v577 = vadd.f32 %v64, %v471
  %v578 = vadd.f32 %v65, %v476
  %v579 = vadd.f32 %v66, %v479
  %v580 = vadd.f32 %v67, %v484
  %v581 = vadd.f32 %v68, %v487
  %v582 = vadd.f32 %v69, %v492
  %v583 = vadd.f32 %v70, %v495
  %v584 = vadd.f32 %v71, %v500
  %v585 = vadd.f32 %v72, %v503
  %v586 = vadd.f32 %v73, %v508
  %v587 = vadd.f32 %v74, %v511
  %v588 = vadd.f32 %v75, %v516
  %v589 = vadd.f32 %v76, %v519
  %v590 = vadd.f32 %v77, %v524
  %v591 = vadd.f32 %v78, %v527
  %v592 = vadd.f32 %v79, %v532
  %v593 = vadd.f32 %v80, %v535
  %v594 = vadd.f32 %v81, %v540
  %v595 = vadd.f32 %v82, %v543
  %v596 = vadd.f32 %v83, %v548
  %v597 = vadd.f32 %v84, %v551
  %v598 = vadd.f32 %v85, %v556
  %v599 = vadd.f32 %v86, %v559
  %v600 = vadd.f32 %v87, %v564
  %v601 = vadd.f32 %v88, %v567
  %602 = vst [vmem:[#allocation2] sm:$0xff] %v570
  %603 = vst [vmem:[#allocation2 + $0x8] sm:$0xff] %v571
  %604 = vst [vmem:[#allocation2 + $0x10] sm:$0xff] %v572
  %605 = vst [vmem:[#allocation2 + $0x18] sm:$0xff] %v573
  %606 = vst [vmem:[#allocation2 + $0x20] sm:$0xff] %v574
  %607 = vst [vmem:[#allocation2 + $0x28] sm:$0xff] %v575
  %608 = vst [vmem:[#allocation2 + $0x30] sm:$0xff] %v576
  %609 = vst [vmem:[#allocation2 + $0x38] sm:$0xff] %v577
  %610 = vst [vmem:[#allocation2 + $0x40] sm:$0xff] %v578
  %611 = vst [vmem:[#allocation2 + $0x48] sm:$0xff] %v579
  %612 = vst [vmem:[#allocation2 + $0x50] sm:$0xff] %v580
  %613 = vst [vmem:[#allocation2 + $0x58] sm:$0xff] %v581
  %614 = vst [vmem:[#allocation2 + $0x60] sm:$0xff] %v582
  %615 = vst [vmem:[#allocation2 + $0x68] sm:$0xff] %v583
  %616 = vst [vmem:[#allocation2 + $0x70] sm:$0xff] %v584
  %617 = vst [vmem:[#allocation2 + $0x78] sm:$0xff] %v585
  %618 = vst [vmem:[#allocation2 + $0x80] sm:$0xff] %v586
  %619 = vst [vmem:[#allocation2 + $0x88] sm:$0xff] %v587
  %620 = vst [vmem:[#allocation2 + $0x90] sm:$0xff] %v588
  %621 = vst [vmem:[#allocation2 + $0x98] sm:$0xff] %v589
  %622 = vst [vmem:[#allocation2 + $0xa0] sm:$0xff] %v590
  %623 = vst [vmem:[#allocation2 + $0xa8] sm:$0xff] %v591
  %624 = vst [vmem:[#allocation2 + $0xb0] sm:$0xff] %v592
  %625 = vst [vmem:[#allocation2 + $0xb8] sm:$0xff] %v593
  %626 = vst [vmem:[#allocation2 + $0xc0] sm:$0xff] %v594
  %627 = vst [vmem:[#allocation2 + $0xc8] sm:$0xff] %v595
  %628 = vst [vmem:[#allocation2 + $0xd0] sm:$0xff] %v596
  %629 = vst [vmem:[#allocation2 + $0xd8] sm:$0xff] %v597
  %630 = vst [vmem:[#allocation2 + $0xe0] sm:$0xff] %v598
  %631 = vst [vmem:[#allocation2 + $0xe8] sm:$0xff] %v599
  %632 = vst [vmem:[#allocation2 + $0xf0] sm:$0xff] %v600
  %633 = vst [vmem:[#allocation2 + $0xf8] sm:$0xff] %v601
  // Predicated region
  $region26: #{gnn_forward.5} parent=0 // pred_check
    %p634 = pneg %p21
  $region27: #{gnn_forward.5} parent=0 // pred_check_branch
    %636 = sbr.rel (%p634) target = $region29
  $region28: #{gnn_forward.5} parent=0 // pred_region
    %v637 = vld [vmem:[#allocation2] sm:$0xff]
    %v638 = vld [vmem:[#allocation2 + $0x8] sm:$0xff]
    %v639 = vld [vmem:[#allocation2 + $0x10] sm:$0xff]
    %v640 = vld [vmem:[#allocation2 + $0x18] sm:$0xff]
    %v641 = vld [vmem:[#allocation2 + $0x20] sm:$0xff]
    %v642 = vld [vmem:[#allocation2 + $0x28] sm:$0xff]
    %v643 = vld [vmem:[#allocation2 + $0x30] sm:$0xff]
    %v644 = vld [vmem:[#allocation2 + $0x38] sm:$0xff]
    %v645 = vld [vmem:[#allocation2 + $0x40] sm:$0xff]
    %v646 = vld [vmem:[#allocation2 + $0x48] sm:$0xff]
    %v647 = vld [vmem:[#allocation2 + $0x50] sm:$0xff]
    %v648 = vld [vmem:[#allocation2 + $0x58] sm:$0xff]
    %v649 = vld [vmem:[#allocation2 + $0x60] sm:$0xff]
    %v650 = vld [vmem:[#allocation2 + $0x68] sm:$0xff]
    %v651 = vld [vmem:[#allocation2 + $0x70] sm:$0xff]
    %v652 = vld [vmem:[#allocation2 + $0x78] sm:$0xff]
    %v653 = vld [vmem:[#allocation2 + $0x80] sm:$0xff]
    %v654 = vld [vmem:[#allocation2 + $0x88] sm:$0xff]
    %v655 = vld [vmem:[#allocation2 + $0x90] sm:$0xff]
    %v656 = vld [vmem:[#allocation2 + $0x98] sm:$0xff]
    %v657 = vld [vmem:[#allocation2 + $0xa0] sm:$0xff]
    %v658 = vld [vmem:[#allocation2 + $0xa8] sm:$0xff]
    %v659 = vld [vmem:[#allocation2 + $0xb0] sm:$0xff]
    %v660 = vld [vmem:[#allocation2 + $0xb8] sm:$0xff]
    %v661 = vld [vmem:[#allocation2 + $0xc0] sm:$0xff]
    %v662 = vld [vmem:[#allocation2 + $0xc8] sm:$0xff]
    %v663 = vld [vmem:[#allocation2 + $0xd0] sm:$0xff]
    %v664 = vld [vmem:[#allocation2 + $0xd8] sm:$0xff]
    %v665 = vld [vmem:[#allocation2 + $0xe0] sm:$0xff]
    %v666 = vld [vmem:[#allocation2 + $0xe8] sm:$0xff]
    %v667 = vld [vmem:[#allocation2 + $0xf0] sm:$0xff]
    %v668 = vld [vmem:[#allocation2 + $0xf8] sm:$0xff]
    %v669 = vld [vmem:[%s2] sm:$0x1]
    %v671 = vlaneseq
    %v672 = vshrl.u32 %v671, 7
    %v673 = vsub.s32 0, %v672
    %v674 = vrot.slane %v669, %v673
    %v676 = vadd.f32 %v637, %v674
    %v677 = vadd.f32 %v638, %v674
    %v678 = vadd.f32 %v639, %v674
    %v679 = vadd.f32 %v640, %v674
    %v680 = vadd.f32 %v641, %v674
    %v681 = vadd.f32 %v642, %v674
    %v682 = vadd.f32 %v643, %v674
    %v683 = vadd.f32 %v644, %v674
    %v684 = vadd.f32 %v645, %v674
    %v685 = vadd.f32 %v646, %v674
    %v686 = vadd.f32 %v647, %v674
    %v687 = vadd.f32 %v648, %v674
    %v688 = vadd.f32 %v649, %v674
    %v689 = vadd.f32 %v650, %v674
    %v690 = vadd.f32 %v651, %v674
    %v691 = vadd.f32 %v652, %v674
    %v692 = vadd.f32 %v653, %v674
    %v693 = vadd.f32 %v654, %v674
    %v694 = vadd.f32 %v655, %v674
    %v695 = vadd.f32 %v656, %v674
    %v696 = vadd.f32 %v657, %v674
    %v697 = vadd.f32 %v658, %v674
    %v698 = vadd.f32 %v659, %v674
    %v699 = vadd.f32 %v660, %v674
    %v700 = vadd.f32 %v661, %v674
    %v701 = vadd.f32 %v662, %v674
    %v702 = vadd.f32 %v663, %v674
    %v703 = vadd.f32 %v664, %v674
    %v704 = vadd.f32 %v665, %v674
    %v705 = vadd.f32 %v666, %v674
    %v706 = vadd.f32 %v667, %v674
    %v707 = vadd.f32 %v668, %v674
    %v708 = vmax.f32 %v676, 0.0
    %v709 = vmax.f32 %v677, 0.0
    %v710 = vmax.f32 %v678, 0.0
    %v711 = vmax.f32 %v679, 0.0
    %v712 = vmax.f32 %v680, 0.0
    %v713 = vmax.f32 %v681, 0.0
    %v714 = vmax.f32 %v682, 0.0
    %v715 = vmax.f32 %v683, 0.0
    %v716 = vmax.f32 %v684, 0.0
    %v717 = vmax.f32 %v685, 0.0
    %v718 = vmax.f32 %v686, 0.0
    %v719 = vmax.f32 %v687, 0.0
    %v720 = vmax.f32 %v688, 0.0
    %v721 = vmax.f32 %v689, 0.0
    %v722 = vmax.f32 %v690, 0.0
    %v723 = vmax.f32 %v691, 0.0
    %v724 = vmax.f32 %v692, 0.0
    %v725 = vmax.f32 %v693, 0.0
    %v726 = vmax.f32 %v694, 0.0
    %v727 = vmax.f32 %v695, 0.0
    %v728 = vmax.f32 %v696, 0.0
    %v729 = vmax.f32 %v697, 0.0
    %v730 = vmax.f32 %v698, 0.0
    %v731 = vmax.f32 %v699, 0.0
    %v732 = vmax.f32 %v700, 0.0
    %v733 = vmax.f32 %v701, 0.0
    %v734 = vmax.f32 %v702, 0.0
    %v735 = vmax.f32 %v703, 0.0
    %v736 = vmax.f32 %v704, 0.0
    %v737 = vmax.f32 %v705, 0.0
    %v738 = vmax.f32 %v706, 0.0
    %v739 = vmax.f32 %v707, 0.0
    %v740 = vpack.c.bf16 %v709, %v708
    %v741 = vpack.c.bf16 %v711, %v710
    %v742 = vpack.c.bf16 %v713, %v712
    %v743 = vpack.c.bf16 %v715, %v714
    %v744 = vpack.c.bf16 %v717, %v716
    %v745 = vpack.c.bf16 %v719, %v718
    %v746 = vpack.c.bf16 %v721, %v720
    %v747 = vpack.c.bf16 %v723, %v722
    %v748 = vpack.c.bf16 %v725, %v724
    %v749 = vpack.c.bf16 %v727, %v726
    %v750 = vpack.c.bf16 %v729, %v728
    %v751 = vpack.c.bf16 %v731, %v730
    %v752 = vpack.c.bf16 %v733, %v732
    %v753 = vpack.c.bf16 %v735, %v734
    %v754 = vpack.c.bf16 %v737, %v736
    %v755 = vpack.c.bf16 %v739, %v738
    %v756 = vld [vmem:[%s3] sm:$0xf]
    %v757 = vld [vmem:[%s3 + $0x4] sm:$0xf]
    %v758 = vld [vmem:[%s3 + $0x8] sm:$0xf]
    %v759 = vld [vmem:[%s3 + $0xc] sm:$0xf]
    %v760 = vld [vmem:[%s3 + $0x10] sm:$0xf]
    %v761 = vld [vmem:[%s3 + $0x14] sm:$0xf]
    %v762 = vld [vmem:[%s3 + $0x18] sm:$0xf]
    %v763 = vld [vmem:[%s3 + $0x1c] sm:$0xf]
    %v764 = vld [vmem:[%s3 + $0x20] sm:$0xf]
    %v765 = vld [vmem:[%s3 + $0x24] sm:$0xf]
    %v766 = vld [vmem:[%s3 + $0x28] sm:$0xf]
    %v767 = vld [vmem:[%s3 + $0x2c] sm:$0xf]
    %v768 = vld [vmem:[%s3 + $0x30] sm:$0xf]
    %v769 = vld [vmem:[%s3 + $0x34] sm:$0xf]
    %v770 = vld [vmem:[%s3 + $0x38] sm:$0xf]
    %v771 = vld [vmem:[%s3 + $0x3c] sm:$0xf]
    %v772 = vld [vmem:[%s4] sm:$0x1]
    %v774 = vlaneseq
    %v775 = vshrl.u32 %v774, 7
    %v776 = vsub.s32 0, %v775
    %v777 = vrot.slane %v772, %v776
    %v795 = vunpack.c.l.b16 %v756
    %v796 = vunpack.c.l.b16 %v757
    %v797 = vunpack.c.l.b16 %v758
    %v798 = vunpack.c.l.b16 %v759
    %v799 = vunpack.c.l.b16 %v760
    %v800 = vunpack.c.l.b16 %v761
    %v801 = vunpack.c.l.b16 %v762
    %v802 = vunpack.c.l.b16 %v763
    %v803 = vunpack.c.l.b16 %v764
    %v804 = vunpack.c.l.b16 %v765
    %v805 = vunpack.c.l.b16 %v766
    %v806 = vunpack.c.l.b16 %v767
    %v807 = vunpack.c.l.b16 %v768
    %v808 = vunpack.c.l.b16 %v769
    %v809 = vunpack.c.l.b16 %v770
    %v810 = vunpack.c.l.b16 %v771
    %v811 = vpack.c.b16 %v796, %v795
    %v812 = vpack.c.b16 %v798, %v797
    %v813 = vpack.c.b16 %v800, %v799
    %v814 = vpack.c.b16 %v802, %v801
    %v815 = vpack.c.b16 %v804, %v803
    %v816 = vpack.c.b16 %v806, %v805
    %v817 = vpack.c.b16 %v808, %v807
    %v818 = vpack.c.b16 %v810, %v809
    %827 = vmatprep.subr.bf16.mxu0 0
    %828 = vmatpush1.bf16.msra.mxu0 %v811
    %829 = vmatprep.subr.bf16.mxu0 0
    %830 = vmatpush1.bf16.msra.mxu0 %v812
    %831 = vmatprep.subr.bf16.mxu0 0
    %832 = vmatpush1.bf16.msra.mxu0 %v813
    %833 = vmatprep.subr.bf16.mxu0 0
    %834 = vmatpush1.bf16.msra.mxu0 %v814
    %835 = vmatprep.subr.bf16.mxu0 0
    %836 = vmatpush1.bf16.msra.mxu0 %v815
    %837 = vmatprep.subr.bf16.mxu0 0
    %838 = vmatpush1.bf16.msra.mxu0 %v816
    %839 = vmatprep.subr.bf16.mxu0 0
    %840 = vmatpush1.bf16.msra.mxu0 %v817
    %841 = vmatprep.subr.bf16.mxu0 0
    %842 = vmatpush1.bf16.msra.mxu0 %v818
    %843 = vmatprep.subr.bf16.mxu0 0
    %844 = vmatpush1.bf16.msra.mxu0 0
    %845 = vmatprep.subr.bf16.mxu0 0
    %846 = vmatpush1.bf16.msra.mxu0 0
    %847 = vmatprep.subr.bf16.mxu0 0
    %848 = vmatpush1.bf16.msra.mxu0 0
    %849 = vmatprep.subr.bf16.mxu0 0
    %850 = vmatpush1.bf16.msra.mxu0 0
    %851 = vmatprep.subr.bf16.mxu0 0
    %852 = vmatpush1.bf16.msra.mxu0 0
    %853 = vmatprep.subr.bf16.mxu0 0
    %854 = vmatpush1.bf16.msra.mxu0 0
    %855 = vmatprep.subr.bf16.mxu0 0
    %856 = vmatpush1.bf16.msra.mxu0 0
    %857 = vmatprep.subr.bf16.mxu0 0
    %858 = vmatpush1.bf16.msra.mxu0 0
    %859 = vmatprep.mubr.bf16.mxu0 0
    %860 = vmatmul.mubr.bf16.gmra.mrb[0].mxu0 %v740
    %v861 = vpop.f32.mrb[0].mxu0
    %v862 = vadd.f32 %v777, %v861
    %v863 = vpop.f32.mrb[0].mxu0
    %v864 = vpop.f32.mrb[0].mxu0
    %v865 = vadd.f32 %v777, %v864
    %v866 = vpop.f32.mrb[0].mxu0
    %867 = vmatprep.mubr.bf16.mxu0 0
    %868 = vmatmul.mubr.bf16.gmra.mrb[0].mxu0 %v741
    %v869 = vpop.f32.mrb[0].mxu0
    %v870 = vadd.f32 %v777, %v869
    %v871 = vpop.f32.mrb[0].mxu0
    %v872 = vpop.f32.mrb[0].mxu0
    %v873 = vadd.f32 %v777, %v872
    %v874 = vpop.f32.mrb[0].mxu0
    %875 = vmatprep.mubr.bf16.mxu0 0
    %876 = vmatmul.mubr.bf16.gmra.mrb[0].mxu0 %v742
    %v877 = vpop.f32.mrb[0].mxu0
    %v878 = vadd.f32 %v777, %v877
    %v879 = vpop.f32.mrb[0].mxu0
    %v880 = vpop.f32.mrb[0].mxu0
    %v881 = vadd.f32 %v777, %v880
    %v882 = vpop.f32.mrb[0].mxu0
    %883 = vmatprep.mubr.bf16.mxu0 0
    %884 = vmatmul.mubr.bf16.gmra.mrb[0].mxu0 %v743
    %v885 = vpop.f32.mrb[0].mxu0
    %v886 = vadd.f32 %v777, %v885
    %v887 = vpop.f32.mrb[0].mxu0
    %v888 = vpop.f32.mrb[0].mxu0
    %v889 = vadd.f32 %v777, %v888
    %v890 = vpop.f32.mrb[0].mxu0
    %891 = vmatprep.mubr.bf16.mxu0 0
    %892 = vmatmul.mubr.bf16.gmra.mrb[0].mxu0 %v744
    %v893 = vpop.f32.mrb[0].mxu0
    %v894 = vadd.f32 %v777, %v893
    %v895 = vpop.f32.mrb[0].mxu0
    %v896 = vpop.f32.mrb[0].mxu0
    %v897 = vadd.f32 %v777, %v896
    %v898 = vpop.f32.mrb[0].mxu0
    %899 = vmatprep.mubr.bf16.mxu0 0
    %900 = vmatmul.mubr.bf16.gmra.mrb[0].mxu0 %v745
    %v901 = vpop.f32.mrb[0].mxu0
    %v902 = vadd.f32 %v777, %v901
    %v903 = vpop.f32.mrb[0].mxu0
    %v904 = vpop.f32.mrb[0].mxu0
    %v905 = vadd.f32 %v777, %v904
    %v906 = vpop.f32.mrb[0].mxu0
    %907 = vmatprep.mubr.bf16.mxu0 0
    %908 = vmatmul.mubr.bf16.gmra.mrb[0].mxu0 %v746
    %v909 = vpop.f32.mrb[0].mxu0
    %v910 = vadd.f32 %v777, %v909
    %v911 = vpop.f32.mrb[0].mxu0
    %v912 = vpop.f32.mrb[0].mxu0
    %v913 = vadd.f32 %v777, %v912
    %v914 = vpop.f32.mrb[0].mxu0
    %915 = vmatprep.mubr.bf16.mxu0 0
    %916 = vmatmul.mubr.bf16.gmra.mrb[0].mxu0 %v747
    %v917 = vpop.f32.mrb[0].mxu0
    %v918 = vadd.f32 %v777, %v917
    %v919 = vpop.f32.mrb[0].mxu0
    %v920 = vpop.f32.mrb[0].mxu0
    %v921 = vadd.f32 %v777, %v920
    %v922 = vpop.f32.mrb[0].mxu0
    %923 = vmatprep.mubr.bf16.mxu0 0
    %924 = vmatmul.mubr.bf16.gmra.mrb[0].mxu0 %v748
    %v925 = vpop.f32.mrb[0].mxu0
    %v926 = vadd.f32 %v777, %v925
    %v927 = vpop.f32.mrb[0].mxu0
    %v928 = vpop.f32.mrb[0].mxu0
    %v929 = vadd.f32 %v777, %v928
    %v930 = vpop.f32.mrb[0].mxu0
    %931 = vmatprep.mubr.bf16.mxu0 0
    %932 = vmatmul.mubr.bf16.gmra.mrb[0].mxu0 %v749
    %v933 = vpop.f32.mrb[0].mxu0
    %v934 = vadd.f32 %v777, %v933
    %v935 = vpop.f32.mrb[0].mxu0
    %v936 = vpop.f32.mrb[0].mxu0
    %v937 = vadd.f32 %v777, %v936
    %v938 = vpop.f32.mrb[0].mxu0
    %939 = vmatprep.mubr.bf16.mxu0 0
    %940 = vmatmul.mubr.bf16.gmra.mrb[0].mxu0 %v750
    %v941 = vpop.f32.mrb[0].mxu0
    %v942 = vadd.f32 %v777, %v941
    %v943 = vpop.f32.mrb[0].mxu0
    %v944 = vpop.f32.mrb[0].mxu0
    %v945 = vadd.f32 %v777, %v944
    %v946 = vpop.f32.mrb[0].mxu0
    %947 = vmatprep.mubr.bf16.mxu0 0
    %948 = vmatmul.mubr.bf16.gmra.mrb[0].mxu0 %v751
    %v949 = vpop.f32.mrb[0].mxu0
    %v950 = vadd.f32 %v777, %v949
    %v951 = vpop.f32.mrb[0].mxu0
    %v952 = vpop.f32.mrb[0].mxu0
    %v953 = vadd.f32 %v777, %v952
    %v954 = vpop.f32.mrb[0].mxu0
    %955 = vmatprep.mubr.bf16.mxu0 0
    %956 = vmatmul.mubr.bf16.gmra.mrb[0].mxu0 %v752
    %v957 = vpop.f32.mrb[0].mxu0
    %v958 = vadd.f32 %v777, %v957
    %v959 = vpop.f32.mrb[0].mxu0
    %v960 = vpop.f32.mrb[0].mxu0
    %v961 = vadd.f32 %v777, %v960
    %v962 = vpop.f32.mrb[0].mxu0
    %963 = vmatprep.mubr.bf16.mxu0 0
    %964 = vmatmul.mubr.bf16.gmra.mrb[0].mxu0 %v753
    %v965 = vpop.f32.mrb[0].mxu0
    %v966 = vadd.f32 %v777, %v965
    %v967 = vpop.f32.mrb[0].mxu0
    %v968 = vpop.f32.mrb[0].mxu0
    %v969 = vadd.f32 %v777, %v968
    %v970 = vpop.f32.mrb[0].mxu0
    %971 = vmatprep.mubr.bf16.mxu0 0
    %972 = vmatmul.mubr.bf16.gmra.mrb[0].mxu0 %v754
    %v973 = vpop.f32.mrb[0].mxu0
    %v974 = vadd.f32 %v777, %v973
    %v975 = vpop.f32.mrb[0].mxu0
    %v976 = vpop.f32.mrb[0].mxu0
    %v977 = vadd.f32 %v777, %v976
    %v978 = vpop.f32.mrb[0].mxu0
    %979 = vmatprep.mubr.bf16.mxu0 0
    %980 = vmatmul.mubr.bf16.gmra.mrb[0].mxu0 %v755
    %v981 = vpop.f32.mrb[0].mxu0
    %v982 = vadd.f32 %v777, %v981
    %v983 = vpop.f32.mrb[0].mxu0
    %v984 = vpop.f32.mrb[0].mxu0
    %v985 = vadd.f32 %v777, %v984
    %v986 = vpop.f32.mrb[0].mxu0
    %987 = vdwg.mxu0
    %988 = vst [vmem:[%s5] sm:$0xff] %v862
    %989 = vst [vmem:[%s5 + $0x8] sm:$0xff] %v865
    %990 = vst [vmem:[%s5 + $0x10] sm:$0xff] %v870
    %991 = vst [vmem:[%s5 + $0x18] sm:$0xff] %v873
    %992 = vst [vmem:[%s5 + $0x20] sm:$0xff] %v878
    %993 = vst [vmem:[%s5 + $0x28] sm:$0xff] %v881
    %994 = vst [vmem:[%s5 + $0x30] sm:$0xff] %v886
    %995 = vst [vmem:[%s5 + $0x38] sm:$0xff] %v889
    %996 = vst [vmem:[%s5 + $0x40] sm:$0xff] %v894
    %997 = vst [vmem:[%s5 + $0x48] sm:$0xff] %v897
    %998 = vst [vmem:[%s5 + $0x50] sm:$0xff] %v902
    %999 = vst [vmem:[%s5 + $0x58] sm:$0xff] %v905
    %1000 = vst [vmem:[%s5 + $0x60] sm:$0xff] %v910
    %1001 = vst [vmem:[%s5 + $0x68] sm:$0xff] %v913
    %1002 = vst [vmem:[%s5 + $0x70] sm:$0xff] %v918
    %1003 = vst [vmem:[%s5 + $0x78] sm:$0xff] %v921
    %1004 = vst [vmem:[%s5 + $0x80] sm:$0xff] %v926
    %1005 = vst [vmem:[%s5 + $0x88] sm:$0xff] %v929
    %1006 = vst [vmem:[%s5 + $0x90] sm:$0xff] %v934
    %1007 = vst [vmem:[%s5 + $0x98] sm:$0xff] %v937
    %1008 = vst [vmem:[%s5 + $0xa0] sm:$0xff] %v942
    %1009 = vst [vmem:[%s5 + $0xa8] sm:$0xff] %v945
    %1010 = vst [vmem:[%s5 + $0xb0] sm:$0xff] %v950
    %1011 = vst [vmem:[%s5 + $0xb8] sm:$0xff] %v953
    %1012 = vst [vmem:[%s5 + $0xc0] sm:$0xff] %v958
    %1013 = vst [vmem:[%s5 + $0xc8] sm:$0xff] %v961
    %1014 = vst [vmem:[%s5 + $0xd0] sm:$0xff] %v966
    %1015 = vst [vmem:[%s5 + $0xd8] sm:$0xff] %v969
    %1016 = vst [vmem:[%s5 + $0xe0] sm:$0xff] %v974
    %1017 = vst [vmem:[%s5 + $0xe8] sm:$0xff] %v977
    %1018 = vst [vmem:[%s5 + $0xf0] sm:$0xff] %v982
    %1019 = vst [vmem:[%s5 + $0xf8] sm:$0xff] %v985
  $region29: #{gnn_forward.5} parent=0 // pred_fallthru
    _
  // Predicated region
  $region30: #{gnn_forward.5} parent=0 // pred_check
    _
  $region31: #{gnn_forward.5} parent=0 // pred_check_branch
    %1021 = sbr.rel (0) target = $region33
  $region32: #{gnn_forward.5} parent=0 // pred_region
    _
  $region33: #{gnn_forward.5} parent=0 // pred_fallthru
    _
  // Predicated region
  $region34: #{gnn_forward.5} parent=0 // pred_check
    _
  $region35: #{gnn_forward.5} parent=0 // pred_check_branch
    %1023 = sbr.rel (0) target = $region37
  $region36: #{gnn_forward.5} parent=0 // pred_region
    _
  $region37: #{gnn_forward.5} parent=0 // pred_fallthru
    _

// kernel: gnn_forward.4
$region0: #{gnn_forward.4}
  #allocation0 [shape = 'u32[]', space=smem, size = 0x4, offset = 0x4, fixed_abs, tag = 'smem constant byte address 0x4 - core index']
  #allocation1 [shape = 'u32[144,128]{1,0:T(1,128)}', space=vmem, size = 0x12000, scoped, tag = 'internal scratch']
  #allocation2 [shape = 'f32[256,128]{1,0:T(8,128)}', space=vmem, size = 0x20000, scoped, tag = 'scratch operand']
  %s0 = inlined_call_operand.vmem [shape: bf16[256,256], index: 0, kind: input, shape index: {}]
  %s1 = inlined_call_operand.vmem [shape: bf16[256,128], index: 1, kind: input, shape index: {}]
  %s2 = inlined_call_operand.vmem [shape: f32[1,128], index: 2, kind: input, shape index: {}]
  %s3 = inlined_call_operand.vmem [shape: bf16[128,128], index: 3, kind: input, shape index: {}]
  %s4 = inlined_call_operand.vmem [shape: f32[1,128], index: 4, kind: input, shape index: {}]
  %s5 = inlined_call_operand.vmem [shape: bf16[256,128], index: 5, kind: output, shape index: {}]
  %s6 = sld [smem:[#allocation0]]
  $region38: #{gnn_forward.4} parent=0
    _
  %s8 = ssub.s32 1, %s6
  %s9 = scalar_select 0, %s8, %s6
  // Predicated region
  $region2: #{gnn_forward.4} parent=0 // pred_check
    _
  $region3: #{gnn_forward.4} parent=0 // pred_check_branch
    %11 = sbr.rel (0) target = $region5
  $region4: #{gnn_forward.4} parent=0 // pred_region
    _
  $region5: #{gnn_forward.4} parent=0 // pred_fallthru
    _
  // Predicated region
  $region6: #{gnn_forward.4} parent=0 // pred_check
    _
  $region7: #{gnn_forward.4} parent=0 // pred_check_branch
    %13 = sbr.rel (0) target = $region9
  $region8: #{gnn_forward.4} parent=0 // pred_region
    _
  $region9: #{gnn_forward.4} parent=0 // pred_fallthru
    _
  // Predicated region
  $region10: #{gnn_forward.4} parent=0 // pred_check
    _
  $region11: #{gnn_forward.4} parent=0 // pred_check_branch
    %15 = sbr.rel (0) target = $region13
  $region12: #{gnn_forward.4} parent=0 // pred_region
    _
  $region13: #{gnn_forward.4} parent=0 // pred_fallthru
    _
  // Predicated region
  $region14: #{gnn_forward.4} parent=0 // pred_check
    _
  $region15: #{gnn_forward.4} parent=0 // pred_check_branch
    %17 = sbr.rel (0) target = $region17
  $region16: #{gnn_forward.4} parent=0 // pred_region
    _
  $region17: #{gnn_forward.4} parent=0 // pred_fallthru
    _
  // Predicated region
  $region18: #{gnn_forward.4} parent=0 // pred_check
    _
  $region19: #{gnn_forward.4} parent=0 // pred_check_branch
    %19 = sbr.rel (0) target = $region21
  $region20: #{gnn_forward.4} parent=0 // pred_region
    _
  $region21: #{gnn_forward.4} parent=0 // pred_fallthru
    _
  %p21 = scmp.eq.s32.totalorder 0, 0
  // Predicated region
  $region22: #{gnn_forward.4} parent=0 // pred_check
    %p22 = pneg %p21
  $region23: #{gnn_forward.4} parent=0 // pred_check_branch
    %24 = sbr.rel (%p22) target = $region25
  $region24: #{gnn_forward.4} parent=0 // pred_region
    %25 = vst [vmem:[#allocation2] sm:$0xff] 0.0
    %26 = vst [vmem:[#allocation2 + $0x8] sm:$0xff] 0.0
    %27 = vst [vmem:[#allocation2 + $0x10] sm:$0xff] 0.0
    %28 = vst [vmem:[#allocation2 + $0x18] sm:$0xff] 0.0
    %29 = vst [vmem:[#allocation2 + $0x20] sm:$0xff] 0.0
    %30 = vst [vmem:[#allocation2 + $0x28] sm:$0xff] 0.0
    %31 = vst [vmem:[#allocation2 + $0x30] sm:$0xff] 0.0
    %32 = vst [vmem:[#allocation2 + $0x38] sm:$0xff] 0.0
    %33 = vst [vmem:[#allocation2 + $0x40] sm:$0xff] 0.0
    %34 = vst [vmem:[#allocation2 + $0x48] sm:$0xff] 0.0
    %35 = vst [vmem:[#allocation2 + $0x50] sm:$0xff] 0.0
    %36 = vst [vmem:[#allocation2 + $0x58] sm:$0xff] 0.0
    %37 = vst [vmem:[#allocation2 + $0x60] sm:$0xff] 0.0
    %38 = vst [vmem:[#allocation2 + $0x68] sm:$0xff] 0.0
    %39 = vst [vmem:[#allocation2 + $0x70] sm:$0xff] 0.0
    %40 = vst [vmem:[#allocation2 + $0x78] sm:$0xff] 0.0
    %41 = vst [vmem:[#allocation2 + $0x80] sm:$0xff] 0.0
    %42 = vst [vmem:[#allocation2 + $0x88] sm:$0xff] 0.0
    %43 = vst [vmem:[#allocation2 + $0x90] sm:$0xff] 0.0
    %44 = vst [vmem:[#allocation2 + $0x98] sm:$0xff] 0.0
    %45 = vst [vmem:[#allocation2 + $0xa0] sm:$0xff] 0.0
    %46 = vst [vmem:[#allocation2 + $0xa8] sm:$0xff] 0.0
    %47 = vst [vmem:[#allocation2 + $0xb0] sm:$0xff] 0.0
    %48 = vst [vmem:[#allocation2 + $0xb8] sm:$0xff] 0.0
    %49 = vst [vmem:[#allocation2 + $0xc0] sm:$0xff] 0.0
    %50 = vst [vmem:[#allocation2 + $0xc8] sm:$0xff] 0.0
    %51 = vst [vmem:[#allocation2 + $0xd0] sm:$0xff] 0.0
    %52 = vst [vmem:[#allocation2 + $0xd8] sm:$0xff] 0.0
    %53 = vst [vmem:[#allocation2 + $0xe0] sm:$0xff] 0.0
    %54 = vst [vmem:[#allocation2 + $0xe8] sm:$0xff] 0.0
    %55 = vst [vmem:[#allocation2 + $0xf0] sm:$0xff] 0.0
    %56 = vst [vmem:[#allocation2 + $0xf8] sm:$0xff] 0.0
  $region25: #{gnn_forward.4} parent=0 // pred_fallthru
    _
  %v57 = vld [vmem:[#allocation2] sm:$0xff]
  %v58 = vld [vmem:[#allocation2 + $0x8] sm:$0xff]
  %v59 = vld [vmem:[#allocation2 + $0x10] sm:$0xff]
  %v60 = vld [vmem:[#allocation2 + $0x18] sm:$0xff]
  %v61 = vld [vmem:[#allocation2 + $0x20] sm:$0xff]
  %v62 = vld [vmem:[#allocation2 + $0x28] sm:$0xff]
  %v63 = vld [vmem:[#allocation2 + $0x30] sm:$0xff]
  %v64 = vld [vmem:[#allocation2 + $0x38] sm:$0xff]
  %v65 = vld [vmem:[#allocation2 + $0x40] sm:$0xff]
  %v66 = vld [vmem:[#allocation2 + $0x48] sm:$0xff]
  %v67 = vld [vmem:[#allocation2 + $0x50] sm:$0xff]
  %v68 = vld [vmem:[#allocation2 + $0x58] sm:$0xff]
  %v69 = vld [vmem:[#allocation2 + $0x60] sm:$0xff]
  %v70 = vld [vmem:[#allocation2 + $0x68] sm:$0xff]
  %v71 = vld [vmem:[#allocation2 + $0x70] sm:$0xff]
  %v72 = vld [vmem:[#allocation2 + $0x78] sm:$0xff]
  %v73 = vld [vmem:[#allocation2 + $0x80] sm:$0xff]
  %v74 = vld [vmem:[#allocation2 + $0x88] sm:$0xff]
  %v75 = vld [vmem:[#allocation2 + $0x90] sm:$0xff]
  %v76 = vld [vmem:[#allocation2 + $0x98] sm:$0xff]
  %v77 = vld [vmem:[#allocation2 + $0xa0] sm:$0xff]
  %v78 = vld [vmem:[#allocation2 + $0xa8] sm:$0xff]
  %v79 = vld [vmem:[#allocation2 + $0xb0] sm:$0xff]
  %v80 = vld [vmem:[#allocation2 + $0xb8] sm:$0xff]
  %v81 = vld [vmem:[#allocation2 + $0xc0] sm:$0xff]
  %v82 = vld [vmem:[#allocation2 + $0xc8] sm:$0xff]
  %v83 = vld [vmem:[#allocation2 + $0xd0] sm:$0xff]
  %v84 = vld [vmem:[#allocation2 + $0xd8] sm:$0xff]
  %v85 = vld [vmem:[#allocation2 + $0xe0] sm:$0xff]
  %v86 = vld [vmem:[#allocation2 + $0xe8] sm:$0xff]
  %v87 = vld [vmem:[#allocation2 + $0xf0] sm:$0xff]
  %v88 = vld [vmem:[#allocation2 + $0xf8] sm:$0xff]
  %v89 = vld [vmem:[%s0] sm:$0xff]
  %v90 = vld [vmem:[%s0 + $0x8] sm:$0xff]
  %v91 = vld [vmem:[%s0 + $0x10] sm:$0xff]
  %v92 = vld [vmem:[%s0 + $0x18] sm:$0xff]
  %v93 = vld [vmem:[%s0 + $0x20] sm:$0xff]
  %v94 = vld [vmem:[%s0 + $0x28] sm:$0xff]
  %v95 = vld [vmem:[%s0 + $0x30] sm:$0xff]
  %v96 = vld [vmem:[%s0 + $0x38] sm:$0xff]
  %v97 = vld [vmem:[%s0 + $0x40] sm:$0xff]
  %v98 = vld [vmem:[%s0 + $0x48] sm:$0xff]
  %v99 = vld [vmem:[%s0 + $0x50] sm:$0xff]
  %v100 = vld [vmem:[%s0 + $0x58] sm:$0xff]
  %v101 = vld [vmem:[%s0 + $0x60] sm:$0xff]
  %v102 = vld [vmem:[%s0 + $0x68] sm:$0xff]
  %v103 = vld [vmem:[%s0 + $0x70] sm:$0xff]
  %v104 = vld [vmem:[%s0 + $0x78] sm:$0xff]
  %v105 = vld [vmem:[%s0 + $0x80] sm:$0xff]
  %v106 = vld [vmem:[%s0 + $0x88] sm:$0xff]
  %v107 = vld [vmem:[%s0 + $0x90] sm:$0xff]
  %v108 = vld [vmem:[%s0 + $0x98] sm:$0xff]
  %v109 = vld [vmem:[%s0 + $0xa0] sm:$0xff]
  %v110 = vld [vmem:[%s0 + $0xa8] sm:$0xff]
  %v111 = vld [vmem:[%s0 + $0xb0] sm:$0xff]
  %v112 = vld [vmem:[%s0 + $0xb8] sm:$0xff]
  %v113 = vld [vmem:[%s0 + $0xc0] sm:$0xff]
  %v114 = vld [vmem:[%s0 + $0xc8] sm:$0xff]
  %v115 = vld [vmem:[%s0 + $0xd0] sm:$0xff]
  %v116 = vld [vmem:[%s0 + $0xd8] sm:$0xff]
  %v117 = vld [vmem:[%s0 + $0xe0] sm:$0xff]
  %v118 = vld [vmem:[%s0 + $0xe8] sm:$0xff]
  %v119 = vld [vmem:[%s0 + $0xf0] sm:$0xff]
  %v120 = vld [vmem:[%s0 + $0xf8] sm:$0xff]
  %v121 = vld [vmem:[%s1] sm:$0xf]
  %v122 = vld [vmem:[%s1 + $0x4] sm:$0xf]
  %v123 = vld [vmem:[%s1 + $0x8] sm:$0xf]
  %v124 = vld [vmem:[%s1 + $0xc] sm:$0xf]
  %v125 = vld [vmem:[%s1 + $0x10] sm:$0xf]
  %v126 = vld [vmem:[%s1 + $0x14] sm:$0xf]
  %v127 = vld [vmem:[%s1 + $0x18] sm:$0xf]
  %v128 = vld [vmem:[%s1 + $0x1c] sm:$0xf]
  %v129 = vld [vmem:[%s1 + $0x20] sm:$0xf]
  %v130 = vld [vmem:[%s1 + $0x24] sm:$0xf]
  %v131 = vld [vmem:[%s1 + $0x28] sm:$0xf]
  %v132 = vld [vmem:[%s1 + $0x2c] sm:$0xf]
  %v133 = vld [vmem:[%s1 + $0x30] sm:$0xf]
  %v134 = vld [vmem:[%s1 + $0x34] sm:$0xf]
  %v135 = vld [vmem:[%s1 + $0x38] sm:$0xf]
  %v136 = vld [vmem:[%s1 + $0x3c] sm:$0xf]
  %v137 = vld [vmem:[%s1 + $0x40] sm:$0xf]
  %v138 = vld [vmem:[%s1 + $0x44] sm:$0xf]
  %v139 = vld [vmem:[%s1 + $0x48] sm:$0xf]
  %v140 = vld [vmem:[%s1 + $0x4c] sm:$0xf]
  %v141 = vld [vmem:[%s1 + $0x50] sm:$0xf]
  %v142 = vld [vmem:[%s1 + $0x54] sm:$0xf]
  %v143 = vld [vmem:[%s1 + $0x58] sm:$0xf]
  %v144 = vld [vmem:[%s1 + $0x5c] sm:$0xf]
  %v145 = vld [vmem:[%s1 + $0x60] sm:$0xf]
  %v146 = vld [vmem:[%s1 + $0x64] sm:$0xf]
  %v147 = vld [vmem:[%s1 + $0x68] sm:$0xf]
  %v148 = vld [vmem:[%s1 + $0x6c] sm:$0xf]
  %v149 = vld [vmem:[%s1 + $0x70] sm:$0xf]
  %v150 = vld [vmem:[%s1 + $0x74] sm:$0xf]
  %v151 = vld [vmem:[%s1 + $0x78] sm:$0xf]
  %v152 = vld [vmem:[%s1 + $0x7c] sm:$0xf]
  %v185 = vunpack.c.l.b16 %v89
  %v186 = vunpack.c.h.b16 %v89
  %v187 = vunpack.c.l.b16 %v90
  %v188 = vunpack.c.h.b16 %v90
  %v189 = vunpack.c.l.b16 %v91
  %v190 = vunpack.c.h.b16 %v91
  %v191 = vunpack.c.l.b16 %v92
  %v192 = vunpack.c.h.b16 %v92
  %v193 = vunpack.c.l.b16 %v93
  %v194 = vunpack.c.h.b16 %v93
  %v195 = vunpack.c.l.b16 %v94
  %v196 = vunpack.c.h.b16 %v94
  %v197 = vunpack.c.l.b16 %v95
  %v198 = vunpack.c.h.b16 %v95
  %v199 = vunpack.c.l.b16 %v96
  %v200 = vunpack.c.h.b16 %v96
  %v201 = vunpack.c.l.b16 %v97
  %v202 = vunpack.c.h.b16 %v97
  %v203 = vunpack.c.l.b16 %v98
  %v204 = vunpack.c.h.b16 %v98
  %v205 = vunpack.c.l.b16 %v99
  %v206 = vunpack.c.h.b16 %v99
  %v207 = vunpack.c.l.b16 %v100
  %v208 = vunpack.c.h.b16 %v100
  %v209 = vunpack.c.l.b16 %v101
  %v210 = vunpack.c.h.b16 %v101
  %v211 = vunpack.c.l.b16 %v102
  %v212 = vunpack.c.h.b16 %v102
  %v213 = vunpack.c.l.b16 %v103
  %v214 = vunpack.c.h.b16 %v103
  %v215 = vunpack.c.l.b16 %v104
  %v216 = vunpack.c.h.b16 %v104
  %v217 = vunpack.c.l.b16 %v105
  %v218 = vunpack.c.h.b16 %v105
  %v219 = vunpack.c.l.b16 %v106
  %v220 = vunpack.c.h.b16 %v106
  %v221 = vunpack.c.l.b16 %v107
  %v222 = vunpack.c.h.b16 %v107
  %v223 = vunpack.c.l.b16 %v108
  %v224 = vunpack.c.h.b16 %v108
  %v225 = vunpack.c.l.b16 %v109
  %v226 = vunpack.c.h.b16 %v109
  %v227 = vunpack.c.l.b16 %v110
  %v228 = vunpack.c.h.b16 %v110
  %v229 = vunpack.c.l.b16 %v111
  %v230 = vunpack.c.h.b16 %v111
  %v231 = vunpack.c.l.b16 %v112
  %v232 = vunpack.c.h.b16 %v112
  %v233 = vunpack.c.l.b16 %v113
  %v234 = vunpack.c.h.b16 %v113
  %v235 = vunpack.c.l.b16 %v114
  %v236 = vunpack.c.h.b16 %v114
  %v237 = vunpack.c.l.b16 %v115
  %v238 = vunpack.c.h.b16 %v115
  %v239 = vunpack.c.l.b16 %v116
  %v240 = vunpack.c.h.b16 %v116
  %v241 = vunpack.c.l.b16 %v117
  %v242 = vunpack.c.h.b16 %v117
  %v243 = vunpack.c.l.b16 %v118
  %v244 = vunpack.c.h.b16 %v118
  %v245 = vunpack.c.l.b16 %v119
  %v246 = vunpack.c.h.b16 %v119
  %v247 = vunpack.c.l.b16 %v120
  %v248 = vunpack.c.h.b16 %v120
  %v249 = vpack.c.b16 %v187, %v185
  %v250 = vpack.c.b16 %v188, %v186
  %v251 = vpack.c.b16 %v191, %v189
  %v252 = vpack.c.b16 %v192, %v190
  %v253 = vpack.c.b16 %v195, %v193
  %v254 = vpack.c.b16 %v196, %v194
  %v255 = vpack.c.b16 %v199, %v197
  %v256 = vpack.c.b16 %v200, %v198
  %v257 = vpack.c.b16 %v203, %v201
  %v258 = vpack.c.b16 %v204, %v202
  %v259 = vpack.c.b16 %v207, %v205
  %v260 = vpack.c.b16 %v208, %v206
  %v261 = vpack.c.b16 %v211, %v209
  %v262 = vpack.c.b16 %v212, %v210
  %v263 = vpack.c.b16 %v215, %v213
  %v264 = vpack.c.b16 %v216, %v214
  %v265 = vpack.c.b16 %v219, %v217
  %v266 = vpack.c.b16 %v220, %v218
  %v267 = vpack.c.b16 %v223, %v221
  %v268 = vpack.c.b16 %v224, %v222
  %v269 = vpack.c.b16 %v227, %v225
  %v270 = vpack.c.b16 %v228, %v226
  %v271 = vpack.c.b16 %v231, %v229
  %v272 = vpack.c.b16 %v232, %v230
  %v273 = vpack.c.b16 %v235, %v233
  %v274 = vpack.c.b16 %v236, %v234
  %v275 = vpack.c.b16 %v239, %v237
  %v276 = vpack.c.b16 %v240, %v238
  %v277 = vpack.c.b16 %v243, %v241
  %v278 = vpack.c.b16 %v244, %v242
  %v279 = vpack.c.b16 %v247, %v245
  %v280 = vpack.c.b16 %v248, %v246
  %v345 = vunpack.c.l.b16 %v121
  %v346 = vunpack.c.l.b16 %v122
  %v347 = vunpack.c.l.b16 %v123
  %v348 = vunpack.c.l.b16 %v124
  %v349 = vunpack.c.l.b16 %v125
  %v350 = vunpack.c.l.b16 %v126
  %v351 = vunpack.c.l.b16 %v127
  %v352 = vunpack.c.l.b16 %v128
  %v353 = vunpack.c.l.b16 %v129
  %v354 = vunpack.c.l.b16 %v130
  %v355 = vunpack.c.l.b16 %v131
  %v356 = vunpack.c.l.b16 %v132
  %v357 = vunpack.c.l.b16 %v133
  %v358 = vunpack.c.l.b16 %v134
  %v359 = vunpack.c.l.b16 %v135
  %v360 = vunpack.c.l.b16 %v136
  %v361 = vunpack.c.l.b16 %v137
  %v362 = vunpack.c.l.b16 %v138
  %v363 = vunpack.c.l.b16 %v139
  %v364 = vunpack.c.l.b16 %v140
  %v365 = vunpack.c.l.b16 %v141
  %v366 = vunpack.c.l.b16 %v142
  %v367 = vunpack.c.l.b16 %v143
  %v368 = vunpack.c.l.b16 %v144
  %v369 = vunpack.c.l.b16 %v145
  %v370 = vunpack.c.l.b16 %v146
  %v371 = vunpack.c.l.b16 %v147
  %v372 = vunpack.c.l.b16 %v148
  %v373 = vunpack.c.l.b16 %v149
  %v374 = vunpack.c.l.b16 %v150
  %v375 = vunpack.c.l.b16 %v151
  %v376 = vunpack.c.l.b16 %v152
  %v377 = vpack.c.b16 %v346, %v345
  %v378 = vpack.c.b16 %v348, %v347
  %v379 = vpack.c.b16 %v350, %v349
  %v380 = vpack.c.b16 %v352, %v351
  %v381 = vpack.c.b16 %v354, %v353
  %v382 = vpack.c.b16 %v356, %v355
  %v383 = vpack.c.b16 %v358, %v357
  %v384 = vpack.c.b16 %v360, %v359
  %v385 = vpack.c.b16 %v362, %v361
  %v386 = vpack.c.b16 %v364, %v363
  %v387 = vpack.c.b16 %v366, %v365
  %v388 = vpack.c.b16 %v368, %v367
  %v389 = vpack.c.b16 %v370, %v369
  %v390 = vpack.c.b16 %v372, %v371
  %v391 = vpack.c.b16 %v374, %v373
  %v392 = vpack.c.b16 %v376, %v375
  %409 = vmatprep.subr.bf16.mxu0 0
  %410 = vmatpush1.bf16.msra.mxu0 %v377
  %411 = vmatprep.subr.bf16.mxu0 0
  %412 = vmatpush1.bf16.msra.mxu0 %v378
  %413 = vmatprep.subr.bf16.mxu0 0
  %414 = vmatpush1.bf16.msra.mxu0 %v379
  %415 = vmatprep.subr.bf16.mxu0 0
  %416 = vmatpush1.bf16.msra.mxu0 %v380
  %417 = vmatprep.subr.bf16.mxu0 0
  %418 = vmatpush1.bf16.msra.mxu0 %v381
  %419 = vmatprep.subr.bf16.mxu0 0
  %420 = vmatpush1.bf16.msra.mxu0 %v382
  %421 = vmatprep.subr.bf16.mxu0 0
  %422 = vmatpush1.bf16.msra.mxu0 %v383
  %423 = vmatprep.subr.bf16.mxu0 0
  %424 = vmatpush1.bf16.msra.mxu0 %v384
  %425 = vmatprep.subr.bf16.mxu0 0
  %426 = vmatpush1.bf16.msra.mxu0 %v385
  %427 = vmatprep.subr.bf16.mxu0 0
  %428 = vmatpush1.bf16.msra.mxu0 %v386
  %429 = vmatprep.subr.bf16.mxu0 0
  %430 = vmatpush1.bf16.msra.mxu0 %v387
  %431 = vmatprep.subr.bf16.mxu0 0
  %432 = vmatpush1.bf16.msra.mxu0 %v388
  %433 = vmatprep.subr.bf16.mxu0 0
  %434 = vmatpush1.bf16.msra.mxu0 %v389
  %435 = vmatprep.subr.bf16.mxu0 0
  %436 = vmatpush1.bf16.msra.mxu0 %v390
  %437 = vmatprep.subr.bf16.mxu0 0
  %438 = vmatpush1.bf16.msra.mxu0 %v391
  %439 = vmatprep.subr.bf16.mxu0 0
  %440 = vmatpush1.bf16.msra.mxu0 %v392
  %441 = vmatprep.mubr.bf16.mxu0 %v250
  %442 = vmatmul.mubr.bf16.gmra.mrb[0].mxu0 %v249
  %v443 = vpop.f32.mrb[0].mxu0
  %v444 = vadd.f32 0.0, %v443
  %v445 = vpop.f32.mrb[0].mxu0
  %v446 = vpop.f32.mrb[0].mxu0
  %v447 = vadd.f32 0.0, %v446
  %v448 = vpop.f32.mrb[0].mxu0
  %449 = vmatprep.mubr.bf16.mxu0 %v252
  %450 = vmatmul.mubr.bf16.gmra.mrb[0].mxu0 %v251
  %v451 = vpop.f32.mrb[0].mxu0
  %v452 = vadd.f32 0.0, %v451
  %v453 = vpop.f32.mrb[0].mxu0
  %v454 = vpop.f32.mrb[0].mxu0
  %v455 = vadd.f32 0.0, %v454
  %v456 = vpop.f32.mrb[0].mxu0
  %457 = vmatprep.mubr.bf16.mxu0 %v254
  %458 = vmatmul.mubr.bf16.gmra.mrb[0].mxu0 %v253
  %v459 = vpop.f32.mrb[0].mxu0
  %v460 = vadd.f32 0.0, %v459
  %v461 = vpop.f32.mrb[0].mxu0
  %v462 = vpop.f32.mrb[0].mxu0
  %v463 = vadd.f32 0.0, %v462
  %v464 = vpop.f32.mrb[0].mxu0
  %465 = vmatprep.mubr.bf16.mxu0 %v256
  %466 = vmatmul.mubr.bf16.gmra.mrb[0].mxu0 %v255
  %v467 = vpop.f32.mrb[0].mxu0
  %v468 = vadd.f32 0.0, %v467
  %v469 = vpop.f32.mrb[0].mxu0
  %v470 = vpop.f32.mrb[0].mxu0
  %v471 = vadd.f32 0.0, %v470
  %v472 = vpop.f32.mrb[0].mxu0
  %473 = vmatprep.mubr.bf16.mxu0 %v258
  %474 = vmatmul.mubr.bf16.gmra.mrb[0].mxu0 %v257
  %v475 = vpop.f32.mrb[0].mxu0
  %v476 = vadd.f32 0.0, %v475
  %v477 = vpop.f32.mrb[0].mxu0
  %v478 = vpop.f32.mrb[0].mxu0
  %v479 = vadd.f32 0.0, %v478
  %v480 = vpop.f32.mrb[0].mxu0
  %481 = vmatprep.mubr.bf16.mxu0 %v260
  %482 = vmatmul.mubr.bf16.gmra.mrb[0].mxu0 %v259
  %v483 = vpop.f32.mrb[0].mxu0
  %v484 = vadd.f32 0.0, %v483
  %v485 = vpop.f32.mrb[0].mxu0
  %v486 = vpop.f32.mrb[0].mxu0
  %v487 = vadd.f32 0.0, %v486
  %v488 = vpop.f32.mrb[0].mxu0
  %489 = vmatprep.mubr.bf16.mxu0 %v262
  %490 = vmatmul.mubr.bf16.gmra.mrb[0].mxu0 %v261
  %v491 = vpop.f32.mrb[0].mxu0
  %v492 = vadd.f32 0.0, %v491
  %v493 = vpop.f32.mrb[0].mxu0
  %v494 = vpop.f32.mrb[0].mxu0
  %v495 = vadd.f32 0.0, %v494
  %v496 = vpop.f32.mrb[0].mxu0
  %497 = vmatprep.mubr.bf16.mxu0 %v264
  %498 = vmatmul.mubr.bf16.gmra.mrb[0].mxu0 %v263
  %v499 = vpop.f32.mrb[0].mxu0
  %v500 = vadd.f32 0.0, %v499
  %v501 = vpop.f32.mrb[0].mxu0
  %v502 = vpop.f32.mrb[0].mxu0
  %v503 = vadd.f32 0.0, %v502
  %v504 = vpop.f32.mrb[0].mxu0
  %505 = vmatprep.mubr.bf16.mxu0 %v266
  %506 = vmatmul.mubr.bf16.gmra.mrb[0].mxu0 %v265
  %v507 = vpop.f32.mrb[0].mxu0
  %v508 = vadd.f32 0.0, %v507
  %v509 = vpop.f32.mrb[0].mxu0
  %v510 = vpop.f32.mrb[0].mxu0
  %v511 = vadd.f32 0.0, %v510
  %v512 = vpop.f32.mrb[0].mxu0
  %513 = vmatprep.mubr.bf16.mxu0 %v268
  %514 = vmatmul.mubr.bf16.gmra.mrb[0].mxu0 %v267
  %v515 = vpop.f32.mrb[0].mxu0
  %v516 = vadd.f32 0.0, %v515
  %v517 = vpop.f32.mrb[0].mxu0
  %v518 = vpop.f32.mrb[0].mxu0
  %v519 = vadd.f32 0.0, %v518
  %v520 = vpop.f32.mrb[0].mxu0
  %521 = vmatprep.mubr.bf16.mxu0 %v270
  %522 = vmatmul.mubr.bf16.gmra.mrb[0].mxu0 %v269
  %v523 = vpop.f32.mrb[0].mxu0
  %v524 = vadd.f32 0.0, %v523
  %v525 = vpop.f32.mrb[0].mxu0
  %v526 = vpop.f32.mrb[0].mxu0
  %v527 = vadd.f32 0.0, %v526
  %v528 = vpop.f32.mrb[0].mxu0
  %529 = vmatprep.mubr.bf16.mxu0 %v272
  %530 = vmatmul.mubr.bf16.gmra.mrb[0].mxu0 %v271
  %v531 = vpop.f32.mrb[0].mxu0
  %v532 = vadd.f32 0.0, %v531
  %v533 = vpop.f32.mrb[0].mxu0
  %v534 = vpop.f32.mrb[0].mxu0
  %v535 = vadd.f32 0.0, %v534
  %v536 = vpop.f32.mrb[0].mxu0
  %537 = vmatprep.mubr.bf16.mxu0 %v274
  %538 = vmatmul.mubr.bf16.gmra.mrb[0].mxu0 %v273
  %v539 = vpop.f32.mrb[0].mxu0
  %v540 = vadd.f32 0.0, %v539
  %v541 = vpop.f32.mrb[0].mxu0
  %v542 = vpop.f32.mrb[0].mxu0
  %v543 = vadd.f32 0.0, %v542
  %v544 = vpop.f32.mrb[0].mxu0
  %545 = vmatprep.mubr.bf16.mxu0 %v276
  %546 = vmatmul.mubr.bf16.gmra.mrb[0].mxu0 %v275
  %v547 = vpop.f32.mrb[0].mxu0
  %v548 = vadd.f32 0.0, %v547
  %v549 = vpop.f32.mrb[0].mxu0
  %v550 = vpop.f32.mrb[0].mxu0
  %v551 = vadd.f32 0.0, %v550
  %v552 = vpop.f32.mrb[0].mxu0
  %553 = vmatprep.mubr.bf16.mxu0 %v278
  %554 = vmatmul.mubr.bf16.gmra.mrb[0].mxu0 %v277
  %v555 = vpop.f32.mrb[0].mxu0
  %v556 = vadd.f32 0.0, %v555
  %v557 = vpop.f32.mrb[0].mxu0
  %v558 = vpop.f32.mrb[0].mxu0
  %v559 = vadd.f32 0.0, %v558
  %v560 = vpop.f32.mrb[0].mxu0
  %561 = vmatprep.mubr.bf16.mxu0 %v280
  %562 = vmatmul.mubr.bf16.gmra.mrb[0].mxu0 %v279
  %v563 = vpop.f32.mrb[0].mxu0
  %v564 = vadd.f32 0.0, %v563
  %v565 = vpop.f32.mrb[0].mxu0
  %v566 = vpop.f32.mrb[0].mxu0
  %v567 = vadd.f32 0.0, %v566
  %v568 = vpop.f32.mrb[0].mxu0
  %569 = vdwg.mxu0
  %v570 = vadd.f32 %v57, %v444
  %v571 = vadd.f32 %v58, %v447
  %v572 = vadd.f32 %v59, %v452
  %v573 = vadd.f32 %v60, %v455
  %v574 = vadd.f32 %v61, %v460
  %v575 = vadd.f32 %v62, %v463
  %v576 = vadd.f32 %v63, %v468
  %v577 = vadd.f32 %v64, %v471
  %v578 = vadd.f32 %v65, %v476
  %v579 = vadd.f32 %v66, %v479
  %v580 = vadd.f32 %v67, %v484
  %v581 = vadd.f32 %v68, %v487
  %v582 = vadd.f32 %v69, %v492
  %v583 = vadd.f32 %v70, %v495
  %v584 = vadd.f32 %v71, %v500
  %v585 = vadd.f32 %v72, %v503
  %v586 = vadd.f32 %v73, %v508
  %v587 = vadd.f32 %v74, %v511
  %v588 = vadd.f32 %v75, %v516
  %v589 = vadd.f32 %v76, %v519
  %v590 = vadd.f32 %v77, %v524
  %v591 = vadd.f32 %v78, %v527
  %v592 = vadd.f32 %v79, %v532
  %v593 = vadd.f32 %v80, %v535
  %v594 = vadd.f32 %v81, %v540
  %v595 = vadd.f32 %v82, %v543
  %v596 = vadd.f32 %v83, %v548
  %v597 = vadd.f32 %v84, %v551
  %v598 = vadd.f32 %v85, %v556
  %v599 = vadd.f32 %v86, %v559
  %v600 = vadd.f32 %v87, %v564
  %v601 = vadd.f32 %v88, %v567
  %602 = vst [vmem:[#allocation2] sm:$0xff] %v570
  %603 = vst [vmem:[#allocation2 + $0x8] sm:$0xff] %v571
  %604 = vst [vmem:[#allocation2 + $0x10] sm:$0xff] %v572
  %605 = vst [vmem:[#allocation2 + $0x18] sm:$0xff] %v573
  %606 = vst [vmem:[#allocation2 + $0x20] sm:$0xff] %v574
  %607 = vst [vmem:[#allocation2 + $0x28] sm:$0xff] %v575
  %608 = vst [vmem:[#allocation2 + $0x30] sm:$0xff] %v576
  %609 = vst [vmem:[#allocation2 + $0x38] sm:$0xff] %v577
  %610 = vst [vmem:[#allocation2 + $0x40] sm:$0xff] %v578
  %611 = vst [vmem:[#allocation2 + $0x48] sm:$0xff] %v579
  %612 = vst [vmem:[#allocation2 + $0x50] sm:$0xff] %v580
  %613 = vst [vmem:[#allocation2 + $0x58] sm:$0xff] %v581
  %614 = vst [vmem:[#allocation2 + $0x60] sm:$0xff] %v582
  %615 = vst [vmem:[#allocation2 + $0x68] sm:$0xff] %v583
  %616 = vst [vmem:[#allocation2 + $0x70] sm:$0xff] %v584
  %617 = vst [vmem:[#allocation2 + $0x78] sm:$0xff] %v585
  %618 = vst [vmem:[#allocation2 + $0x80] sm:$0xff] %v586
  %619 = vst [vmem:[#allocation2 + $0x88] sm:$0xff] %v587
  %620 = vst [vmem:[#allocation2 + $0x90] sm:$0xff] %v588
  %621 = vst [vmem:[#allocation2 + $0x98] sm:$0xff] %v589
  %622 = vst [vmem:[#allocation2 + $0xa0] sm:$0xff] %v590
  %623 = vst [vmem:[#allocation2 + $0xa8] sm:$0xff] %v591
  %624 = vst [vmem:[#allocation2 + $0xb0] sm:$0xff] %v592
  %625 = vst [vmem:[#allocation2 + $0xb8] sm:$0xff] %v593
  %626 = vst [vmem:[#allocation2 + $0xc0] sm:$0xff] %v594
  %627 = vst [vmem:[#allocation2 + $0xc8] sm:$0xff] %v595
  %628 = vst [vmem:[#allocation2 + $0xd0] sm:$0xff] %v596
  %629 = vst [vmem:[#allocation2 + $0xd8] sm:$0xff] %v597
  %630 = vst [vmem:[#allocation2 + $0xe0] sm:$0xff] %v598
  %631 = vst [vmem:[#allocation2 + $0xe8] sm:$0xff] %v599
  %632 = vst [vmem:[#allocation2 + $0xf0] sm:$0xff] %v600
  %633 = vst [vmem:[#allocation2 + $0xf8] sm:$0xff] %v601
  // Predicated region
  $region26: #{gnn_forward.4} parent=0 // pred_check
    %p634 = pneg %p21
  $region27: #{gnn_forward.4} parent=0 // pred_check_branch
    %636 = sbr.rel (%p634) target = $region29
  $region28: #{gnn_forward.4} parent=0 // pred_region
    %v637 = vld [vmem:[#allocation2] sm:$0xff]
    %v638 = vld [vmem:[#allocation2 + $0x8] sm:$0xff]
    %v639 = vld [vmem:[#allocation2 + $0x10] sm:$0xff]
    %v640 = vld [vmem:[#allocation2 + $0x18] sm:$0xff]
    %v641 = vld [vmem:[#allocation2 + $0x20] sm:$0xff]
    %v642 = vld [vmem:[#allocation2 + $0x28] sm:$0xff]
    %v643 = vld [vmem:[#allocation2 + $0x30] sm:$0xff]
    %v644 = vld [vmem:[#allocation2 + $0x38] sm:$0xff]
    %v645 = vld [vmem:[#allocation2 + $0x40] sm:$0xff]
    %v646 = vld [vmem:[#allocation2 + $0x48] sm:$0xff]
    %v647 = vld [vmem:[#allocation2 + $0x50] sm:$0xff]
    %v648 = vld [vmem:[#allocation2 + $0x58] sm:$0xff]
    %v649 = vld [vmem:[#allocation2 + $0x60] sm:$0xff]
    %v650 = vld [vmem:[#allocation2 + $0x68] sm:$0xff]
    %v651 = vld [vmem:[#allocation2 + $0x70] sm:$0xff]
    %v652 = vld [vmem:[#allocation2 + $0x78] sm:$0xff]
    %v653 = vld [vmem:[#allocation2 + $0x80] sm:$0xff]
    %v654 = vld [vmem:[#allocation2 + $0x88] sm:$0xff]
    %v655 = vld [vmem:[#allocation2 + $0x90] sm:$0xff]
    %v656 = vld [vmem:[#allocation2 + $0x98] sm:$0xff]
    %v657 = vld [vmem:[#allocation2 + $0xa0] sm:$0xff]
    %v658 = vld [vmem:[#allocation2 + $0xa8] sm:$0xff]
    %v659 = vld [vmem:[#allocation2 + $0xb0] sm:$0xff]
    %v660 = vld [vmem:[#allocation2 + $0xb8] sm:$0xff]
    %v661 = vld [vmem:[#allocation2 + $0xc0] sm:$0xff]
    %v662 = vld [vmem:[#allocation2 + $0xc8] sm:$0xff]
    %v663 = vld [vmem:[#allocation2 + $0xd0] sm:$0xff]
    %v664 = vld [vmem:[#allocation2 + $0xd8] sm:$0xff]
    %v665 = vld [vmem:[#allocation2 + $0xe0] sm:$0xff]
    %v666 = vld [vmem:[#allocation2 + $0xe8] sm:$0xff]
    %v667 = vld [vmem:[#allocation2 + $0xf0] sm:$0xff]
    %v668 = vld [vmem:[#allocation2 + $0xf8] sm:$0xff]
    %v669 = vld [vmem:[%s2] sm:$0x1]
    %v671 = vlaneseq
    %v672 = vshrl.u32 %v671, 7
    %v673 = vsub.s32 0, %v672
    %v674 = vrot.slane %v669, %v673
    %v676 = vadd.f32 %v637, %v674
    %v677 = vadd.f32 %v638, %v674
    %v678 = vadd.f32 %v639, %v674
    %v679 = vadd.f32 %v640, %v674
    %v680 = vadd.f32 %v641, %v674
    %v681 = vadd.f32 %v642, %v674
    %v682 = vadd.f32 %v643, %v674
    %v683 = vadd.f32 %v644, %v674
    %v684 = vadd.f32 %v645, %v674
    %v685 = vadd.f32 %v646, %v674
    %v686 = vadd.f32 %v647, %v674
    %v687 = vadd.f32 %v648, %v674
    %v688 = vadd.f32 %v649, %v674
    %v689 = vadd.f32 %v650, %v674
    %v690 = vadd.f32 %v651, %v674
    %v691 = vadd.f32 %v652, %v674
    %v692 = vadd.f32 %v653, %v674
    %v693 = vadd.f32 %v654, %v674
    %v694 = vadd.f32 %v655, %v674
    %v695 = vadd.f32 %v656, %v674
    %v696 = vadd.f32 %v657, %v674
    %v697 = vadd.f32 %v658, %v674
    %v698 = vadd.f32 %v659, %v674
    %v699 = vadd.f32 %v660, %v674
    %v700 = vadd.f32 %v661, %v674
    %v701 = vadd.f32 %v662, %v674
    %v702 = vadd.f32 %v663, %v674
    %v703 = vadd.f32 %v664, %v674
    %v704 = vadd.f32 %v665, %v674
    %v705 = vadd.f32 %v666, %v674
    %v706 = vadd.f32 %v667, %v674
    %v707 = vadd.f32 %v668, %v674
    %v708 = vmax.f32 %v676, 0.0
    %v709 = vmax.f32 %v677, 0.0
    %v710 = vmax.f32 %v678, 0.0
    %v711 = vmax.f32 %v679, 0.0
    %v712 = vmax.f32 %v680, 0.0
    %v713 = vmax.f32 %v681, 0.0
    %v714 = vmax.f32 %v682, 0.0
    %v715 = vmax.f32 %v683, 0.0
    %v716 = vmax.f32 %v684, 0.0
    %v717 = vmax.f32 %v685, 0.0
    %v718 = vmax.f32 %v686, 0.0
    %v719 = vmax.f32 %v687, 0.0
    %v720 = vmax.f32 %v688, 0.0
    %v721 = vmax.f32 %v689, 0.0
    %v722 = vmax.f32 %v690, 0.0
    %v723 = vmax.f32 %v691, 0.0
    %v724 = vmax.f32 %v692, 0.0
    %v725 = vmax.f32 %v693, 0.0
    %v726 = vmax.f32 %v694, 0.0
    %v727 = vmax.f32 %v695, 0.0
    %v728 = vmax.f32 %v696, 0.0
    %v729 = vmax.f32 %v697, 0.0
    %v730 = vmax.f32 %v698, 0.0
    %v731 = vmax.f32 %v699, 0.0
    %v732 = vmax.f32 %v700, 0.0
    %v733 = vmax.f32 %v701, 0.0
    %v734 = vmax.f32 %v702, 0.0
    %v735 = vmax.f32 %v703, 0.0
    %v736 = vmax.f32 %v704, 0.0
    %v737 = vmax.f32 %v705, 0.0
    %v738 = vmax.f32 %v706, 0.0
    %v739 = vmax.f32 %v707, 0.0
    %v740 = vpack.c.bf16 %v709, %v708
    %v741 = vpack.c.bf16 %v711, %v710
    %v742 = vpack.c.bf16 %v713, %v712
    %v743 = vpack.c.bf16 %v715, %v714
    %v744 = vpack.c.bf16 %v717, %v716
    %v745 = vpack.c.bf16 %v719, %v718
    %v746 = vpack.c.bf16 %v721, %v720
    %v747 = vpack.c.bf16 %v723, %v722
    %v748 = vpack.c.bf16 %v725, %v724
    %v749 = vpack.c.bf16 %v727, %v726
    %v750 = vpack.c.bf16 %v729, %v728
    %v751 = vpack.c.bf16 %v731, %v730
    %v752 = vpack.c.bf16 %v733, %v732
    %v753 = vpack.c.bf16 %v735, %v734
    %v754 = vpack.c.bf16 %v737, %v736
    %v755 = vpack.c.bf16 %v739, %v738
    %v756 = vld [vmem:[%s3] sm:$0xf]
    %v757 = vld [vmem:[%s3 + $0x4] sm:$0xf]
    %v758 = vld [vmem:[%s3 + $0x8] sm:$0xf]
    %v759 = vld [vmem:[%s3 + $0xc] sm:$0xf]
    %v760 = vld [vmem:[%s3 + $0x10] sm:$0xf]
    %v761 = vld [vmem:[%s3 + $0x14] sm:$0xf]
    %v762 = vld [vmem:[%s3 + $0x18] sm:$0xf]
    %v763 = vld [vmem:[%s3 + $0x1c] sm:$0xf]
    %v764 = vld [vmem:[%s3 + $0x20] sm:$0xf]
    %v765 = vld [vmem:[%s3 + $0x24] sm:$0xf]
    %v766 = vld [vmem:[%s3 + $0x28] sm:$0xf]
    %v767 = vld [vmem:[%s3 + $0x2c] sm:$0xf]
    %v768 = vld [vmem:[%s3 + $0x30] sm:$0xf]
    %v769 = vld [vmem:[%s3 + $0x34] sm:$0xf]
    %v770 = vld [vmem:[%s3 + $0x38] sm:$0xf]
    %v771 = vld [vmem:[%s3 + $0x3c] sm:$0xf]
    %v772 = vld [vmem:[%s4] sm:$0x1]
    %v774 = vlaneseq
    %v775 = vshrl.u32 %v774, 7
    %v776 = vsub.s32 0, %v775
    %v777 = vrot.slane %v772, %v776
    %v795 = vunpack.c.l.b16 %v756
    %v796 = vunpack.c.l.b16 %v757
    %v797 = vunpack.c.l.b16 %v758
    %v798 = vunpack.c.l.b16 %v759
    %v799 = vunpack.c.l.b16 %v760
    %v800 = vunpack.c.l.b16 %v761
    %v801 = vunpack.c.l.b16 %v762
    %v802 = vunpack.c.l.b16 %v763
    %v803 = vunpack.c.l.b16 %v764
    %v804 = vunpack.c.l.b16 %v765
    %v805 = vunpack.c.l.b16 %v766
    %v806 = vunpack.c.l.b16 %v767
    %v807 = vunpack.c.l.b16 %v768
    %v808 = vunpack.c.l.b16 %v769
    %v809 = vunpack.c.l.b16 %v770
    %v810 = vunpack.c.l.b16 %v771
    %v811 = vpack.c.b16 %v796, %v795
    %v812 = vpack.c.b16 %v798, %v797
    %v813 = vpack.c.b16 %v800, %v799
    %v814 = vpack.c.b16 %v802, %v801
    %v815 = vpack.c.b16 %v804, %v803
    %v816 = vpack.c.b16 %v806, %v805
    %v817 = vpack.c.b16 %v808, %v807
    %v818 = vpack.c.b16 %v810, %v809
    %827 = vmatprep.subr.bf16.mxu0 0
    %828 = vmatpush1.bf16.msra.mxu0 %v811
    %829 = vmatprep.subr.bf16.mxu0 0
    %830 = vmatpush1.bf16.msra.mxu0 %v812
    %831 = vmatprep.subr.bf16.mxu0 0
    %832 = vmatpush1.bf16.msra.mxu0 %v813
    %833 = vmatprep.subr.bf16.mxu0 0
    %834 = vmatpush1.bf16.msra.mxu0 %v814
    %835 = vmatprep.subr.bf16.mxu0 0
    %836 = vmatpush1.bf16.msra.mxu0 %v815
    %837 = vmatprep.subr.bf16.mxu0 0
    %838 = vmatpush1.bf16.msra.mxu0 %v816
    %839 = vmatprep.subr.bf16.mxu0 0
    %840 = vmatpush1.bf16.msra.mxu0 %v817
    %841 = vmatprep.subr.bf16.mxu0 0
    %842 = vmatpush1.bf16.msra.mxu0 %v818
    %843 = vmatprep.subr.bf16.mxu0 0
    %844 = vmatpush1.bf16.msra.mxu0 0
    %845 = vmatprep.subr.bf16.mxu0 0
    %846 = vmatpush1.bf16.msra.mxu0 0
    %847 = vmatprep.subr.bf16.mxu0 0
    %848 = vmatpush1.bf16.msra.mxu0 0
    %849 = vmatprep.subr.bf16.mxu0 0
    %850 = vmatpush1.bf16.msra.mxu0 0
    %851 = vmatprep.subr.bf16.mxu0 0
    %852 = vmatpush1.bf16.msra.mxu0 0
    %853 = vmatprep.subr.bf16.mxu0 0
    %854 = vmatpush1.bf16.msra.mxu0 0
    %855 = vmatprep.subr.bf16.mxu0 0
    %856 = vmatpush1.bf16.msra.mxu0 0
    %857 = vmatprep.subr.bf16.mxu0 0
    %858 = vmatpush1.bf16.msra.mxu0 0
    %859 = vmatprep.mubr.bf16.mxu0 0
    %860 = vmatmul.mubr.bf16.gmra.mrb[0].mxu0 %v740
    %v861 = vpop.f32.mrb[0].mxu0
    %v862 = vadd.f32 %v777, %v861
    %v863 = vpop.f32.mrb[0].mxu0
    %v864 = vpop.f32.mrb[0].mxu0
    %v865 = vadd.f32 %v777, %v864
    %v866 = vpop.f32.mrb[0].mxu0
    %867 = vmatprep.mubr.bf16.mxu0 0
    %868 = vmatmul.mubr.bf16.gmra.mrb[0].mxu0 %v741
    %v869 = vpop.f32.mrb[0].mxu0
    %v870 = vadd.f32 %v777, %v869
    %v871 = vpop.f32.mrb[0].mxu0
    %v872 = vpop.f32.mrb[0].mxu0
    %v873 = vadd.f32 %v777, %v872
    %v874 = vpop.f32.mrb[0].mxu0
    %875 = vmatprep.mubr.bf16.mxu0 0
    %876 = vmatmul.mubr.bf16.gmra.mrb[0].mxu0 %v742
    %v877 = vpop.f32.mrb[0].mxu0
    %v878 = vadd.f32 %v777, %v877
    %v879 = vpop.f32.mrb[0].mxu0
    %v880 = vpop.f32.mrb[0].mxu0
    %v881 = vadd.f32 %v777, %v880
    %v882 = vpop.f32.mrb[0].mxu0
    %883 = vmatprep.mubr.bf16.mxu0 0
    %884 = vmatmul.mubr.bf16.gmra.mrb[0].mxu0 %v743
    %v885 = vpop.f32.mrb[0].mxu0
    %v886 = vadd.f32 %v777, %v885
    %v887 = vpop.f32.mrb[0].mxu0
    %v888 = vpop.f32.mrb[0].mxu0
    %v889 = vadd.f32 %v777, %v888
    %v890 = vpop.f32.mrb[0].mxu0
    %891 = vmatprep.mubr.bf16.mxu0 0
    %892 = vmatmul.mubr.bf16.gmra.mrb[0].mxu0 %v744
    %v893 = vpop.f32.mrb[0].mxu0
    %v894 = vadd.f32 %v777, %v893
    %v895 = vpop.f32.mrb[0].mxu0
    %v896 = vpop.f32.mrb[0].mxu0
    %v897 = vadd.f32 %v777, %v896
    %v898 = vpop.f32.mrb[0].mxu0
    %899 = vmatprep.mubr.bf16.mxu0 0
    %900 = vmatmul.mubr.bf16.gmra.mrb[0].mxu0 %v745
    %v901 = vpop.f32.mrb[0].mxu0
    %v902 = vadd.f32 %v777, %v901
    %v903 = vpop.f32.mrb[0].mxu0
    %v904 = vpop.f32.mrb[0].mxu0
    %v905 = vadd.f32 %v777, %v904
    %v906 = vpop.f32.mrb[0].mxu0
    %907 = vmatprep.mubr.bf16.mxu0 0
    %908 = vmatmul.mubr.bf16.gmra.mrb[0].mxu0 %v746
    %v909 = vpop.f32.mrb[0].mxu0
    %v910 = vadd.f32 %v777, %v909
    %v911 = vpop.f32.mrb[0].mxu0
    %v912 = vpop.f32.mrb[0].mxu0
    %v913 = vadd.f32 %v777, %v912
    %v914 = vpop.f32.mrb[0].mxu0
    %915 = vmatprep.mubr.bf16.mxu0 0
    %916 = vmatmul.mubr.bf16.gmra.mrb[0].mxu0 %v747
    %v917 = vpop.f32.mrb[0].mxu0
    %v918 = vadd.f32 %v777, %v917
    %v919 = vpop.f32.mrb[0].mxu0
    %v920 = vpop.f32.mrb[0].mxu0
    %v921 = vadd.f32 %v777, %v920
    %v922 = vpop.f32.mrb[0].mxu0
    %923 = vmatprep.mubr.bf16.mxu0 0
    %924 = vmatmul.mubr.bf16.gmra.mrb[0].mxu0 %v748
    %v925 = vpop.f32.mrb[0].mxu0
    %v926 = vadd.f32 %v777, %v925
    %v927 = vpop.f32.mrb[0].mxu0
    %v928 = vpop.f32.mrb[0].mxu0
    %v929 = vadd.f32 %v777, %v928
    %v930 = vpop.f32.mrb[0].mxu0
    %931 = vmatprep.mubr.bf16.mxu0 0
    %932 = vmatmul.mubr.bf16.gmra.mrb[0].mxu0 %v749
    %v933 = vpop.f32.mrb[0].mxu0
    %v934 = vadd.f32 %v777, %v933
    %v935 = vpop.f32.mrb[0].mxu0
    %v936 = vpop.f32.mrb[0].mxu0
    %v937 = vadd.f32 %v777, %v936
    %v938 = vpop.f32.mrb[0].mxu0
    %939 = vmatprep.mubr.bf16.mxu0 0
    %940 = vmatmul.mubr.bf16.gmra.mrb[0].mxu0 %v750
    %v941 = vpop.f32.mrb[0].mxu0
    %v942 = vadd.f32 %v777, %v941
    %v943 = vpop.f32.mrb[0].mxu0
    %v944 = vpop.f32.mrb[0].mxu0
    %v945 = vadd.f32 %v777, %v944
    %v946 = vpop.f32.mrb[0].mxu0
    %947 = vmatprep.mubr.bf16.mxu0 0
    %948 = vmatmul.mubr.bf16.gmra.mrb[0].mxu0 %v751
    %v949 = vpop.f32.mrb[0].mxu0
    %v950 = vadd.f32 %v777, %v949
    %v951 = vpop.f32.mrb[0].mxu0
    %v952 = vpop.f32.mrb[0].mxu0
    %v953 = vadd.f32 %v777, %v952
    %v954 = vpop.f32.mrb[0].mxu0
    %955 = vmatprep.mubr.bf16.mxu0 0
    %956 = vmatmul.mubr.bf16.gmra.mrb[0].mxu0 %v752
    %v957 = vpop.f32.mrb[0].mxu0
    %v958 = vadd.f32 %v777, %v957
    %v959 = vpop.f32.mrb[0].mxu0
    %v960 = vpop.f32.mrb[0].mxu0
    %v961 = vadd.f32 %v777, %v960
    %v962 = vpop.f32.mrb[0].mxu0
    %963 = vmatprep.mubr.bf16.mxu0 0
    %964 = vmatmul.mubr.bf16.gmra.mrb[0].mxu0 %v753
    %v965 = vpop.f32.mrb[0].mxu0
    %v966 = vadd.f32 %v777, %v965
    %v967 = vpop.f32.mrb[0].mxu0
    %v968 = vpop.f32.mrb[0].mxu0
    %v969 = vadd.f32 %v777, %v968
    %v970 = vpop.f32.mrb[0].mxu0
    %971 = vmatprep.mubr.bf16.mxu0 0
    %972 = vmatmul.mubr.bf16.gmra.mrb[0].mxu0 %v754
    %v973 = vpop.f32.mrb[0].mxu0
    %v974 = vadd.f32 %v777, %v973
    %v975 = vpop.f32.mrb[0].mxu0
    %v976 = vpop.f32.mrb[0].mxu0
    %v977 = vadd.f32 %v777, %v976
    %v978 = vpop.f32.mrb[0].mxu0
    %979 = vmatprep.mubr.bf16.mxu0 0
    %980 = vmatmul.mubr.bf16.gmra.mrb[0].mxu0 %v755
    %v981 = vpop.f32.mrb[0].mxu0
    %v982 = vadd.f32 %v777, %v981
    %v983 = vpop.f32.mrb[0].mxu0
    %v984 = vpop.f32.mrb[0].mxu0
    %v985 = vadd.f32 %v777, %v984
    %v986 = vpop.f32.mrb[0].mxu0
    %987 = vdwg.mxu0
    %v988 = vpack.c.bf16 %v865, %v862
    %v989 = vpack.c.bf16 %v873, %v870
    %v990 = vpack.c.bf16 %v881, %v878
    %v991 = vpack.c.bf16 %v889, %v886
    %v992 = vpack.c.bf16 %v897, %v894
    %v993 = vpack.c.bf16 %v905, %v902
    %v994 = vpack.c.bf16 %v913, %v910
    %v995 = vpack.c.bf16 %v921, %v918
    %v996 = vpack.c.bf16 %v929, %v926
    %v997 = vpack.c.bf16 %v937, %v934
    %v998 = vpack.c.bf16 %v945, %v942
    %v999 = vpack.c.bf16 %v953, %v950
    %v1000 = vpack.c.bf16 %v961, %v958
    %v1001 = vpack.c.bf16 %v969, %v966
    %v1002 = vpack.c.bf16 %v977, %v974
    %v1003 = vpack.c.bf16 %v985, %v982
    %v1020 = vunpack.c.l.b16 %v988
    %v1021 = vunpack.c.h.b16 %v988
    %v1022 = vunpack.c.l.b16 %v989
    %v1023 = vunpack.c.h.b16 %v989
    %v1024 = vunpack.c.l.b16 %v990
    %v1025 = vunpack.c.h.b16 %v990
    %v1026 = vunpack.c.l.b16 %v991
    %v1027 = vunpack.c.h.b16 %v991
    %v1028 = vunpack.c.l.b16 %v992
    %v1029 = vunpack.c.h.b16 %v992
    %v1030 = vunpack.c.l.b16 %v993
    %v1031 = vunpack.c.h.b16 %v993
    %v1032 = vunpack.c.l.b16 %v994
    %v1033 = vunpack.c.h.b16 %v994
    %v1034 = vunpack.c.l.b16 %v995
    %v1035 = vunpack.c.h.b16 %v995
    %v1036 = vunpack.c.l.b16 %v996
    %v1037 = vunpack.c.h.b16 %v996
    %v1038 = vunpack.c.l.b16 %v997
    %v1039 = vunpack.c.h.b16 %v997
    %v1040 = vunpack.c.l.b16 %v998
    %v1041 = vunpack.c.h.b16 %v998
    %v1042 = vunpack.c.l.b16 %v999
    %v1043 = vunpack.c.h.b16 %v999
    %v1044 = vunpack.c.l.b16 %v1000
    %v1045 = vunpack.c.h.b16 %v1000
    %v1046 = vunpack.c.l.b16 %v1001
    %v1047 = vunpack.c.h.b16 %v1001
    %v1048 = vunpack.c.l.b16 %v1002
    %v1049 = vunpack.c.h.b16 %v1002
    %v1050 = vunpack.c.l.b16 %v1003
    %v1051 = vunpack.c.h.b16 %v1003
    %v1052 = vpack.c.b16 %v1020, %v1020
    %v1053 = vpack.c.b16 %v1021, %v1021
    %v1054 = vpack.c.b16 %v1022, %v1022
    %v1055 = vpack.c.b16 %v1023, %v1023
    %v1056 = vpack.c.b16 %v1024, %v1024
    %v1057 = vpack.c.b16 %v1025, %v1025
    %v1058 = vpack.c.b16 %v1026, %v1026
    %v1059 = vpack.c.b16 %v1027, %v1027
    %v1060 = vpack.c.b16 %v1028, %v1028
    %v1061 = vpack.c.b16 %v1029, %v1029
    %v1062 = vpack.c.b16 %v1030, %v1030
    %v1063 = vpack.c.b16 %v1031, %v1031
    %v1064 = vpack.c.b16 %v1032, %v1032
    %v1065 = vpack.c.b16 %v1033, %v1033
    %v1066 = vpack.c.b16 %v1034, %v1034
    %v1067 = vpack.c.b16 %v1035, %v1035
    %v1068 = vpack.c.b16 %v1036, %v1036
    %v1069 = vpack.c.b16 %v1037, %v1037
    %v1070 = vpack.c.b16 %v1038, %v1038
    %v1071 = vpack.c.b16 %v1039, %v1039
    %v1072 = vpack.c.b16 %v1040, %v1040
    %v1073 = vpack.c.b16 %v1041, %v1041
    %v1074 = vpack.c.b16 %v1042, %v1042
    %v1075 = vpack.c.b16 %v1043, %v1043
    %v1076 = vpack.c.b16 %v1044, %v1044
    %v1077 = vpack.c.b16 %v1045, %v1045
    %v1078 = vpack.c.b16 %v1046, %v1046
    %v1079 = vpack.c.b16 %v1047, %v1047
    %v1080 = vpack.c.b16 %v1048, %v1048
    %v1081 = vpack.c.b16 %v1049, %v1049
    %v1082 = vpack.c.b16 %v1050, %v1050
    %v1083 = vpack.c.b16 %v1051, %v1051
    %1116 = vst [vmem:[%s5] sm:$0xf] %v1052
    %1117 = vst [vmem:[%s5 + $0x4] sm:$0xf] %v1053
    %1118 = vst [vmem:[%s5 + $0x8] sm:$0xf] %v1054
    %1119 = vst [vmem:[%s5 + $0xc] sm:$0xf] %v1055
    %1120 = vst [vmem:[%s5 + $0x10] sm:$0xf] %v1056
    %1121 = vst [vmem:[%s5 + $0x14] sm:$0xf] %v1057
    %1122 = vst [vmem:[%s5 + $0x18] sm:$0xf] %v1058
    %1123 = vst [vmem:[%s5 + $0x1c] sm:$0xf] %v1059
    %1124 = vst [vmem:[%s5 + $0x20] sm:$0xf] %v1060
    %1125 = vst [vmem:[%s5 + $0x24] sm:$0xf] %v1061
    %1126 = vst [vmem:[%s5 + $0x28] sm:$0xf] %v1062
    %1127 = vst [vmem:[%s5 + $0x2c] sm:$0xf] %v1063
    %1128 = vst [vmem:[%s5 + $0x30] sm:$0xf] %v1064
    %1129 = vst [vmem:[%s5 + $0x34] sm:$0xf] %v1065
    %1130 = vst [vmem:[%s5 + $0x38] sm:$0xf] %v1066
    %1131 = vst [vmem:[%s5 + $0x3c] sm:$0xf] %v1067
    %1132 = vst [vmem:[%s5 + $0x40] sm:$0xf] %v1068
    %1133 = vst [vmem:[%s5 + $0x44] sm:$0xf] %v1069
    %1134 = vst [vmem:[%s5 + $0x48] sm:$0xf] %v1070
    %1135 = vst [vmem:[%s5 + $0x4c] sm:$0xf] %v1071
    %1136 = vst [vmem:[%s5 + $0x50] sm:$0xf] %v1072
    %1137 = vst [vmem:[%s5 + $0x54] sm:$0xf] %v1073
    %1138 = vst [vmem:[%s5 + $0x58] sm:$0xf] %v1074
    %1139 = vst [vmem:[%s5 + $0x5c] sm:$0xf] %v1075
    %1140 = vst [vmem:[%s5 + $0x60] sm:$0xf] %v1076
    %1141 = vst [vmem:[%s5 + $0x64] sm:$0xf] %v1077
    %1142 = vst [vmem:[%s5 + $0x68] sm:$0xf] %v1078
    %1143 = vst [vmem:[%s5 + $0x6c] sm:$0xf] %v1079
    %1144 = vst [vmem:[%s5 + $0x70] sm:$0xf] %v1080
    %1145 = vst [vmem:[%s5 + $0x74] sm:$0xf] %v1081
    %1146 = vst [vmem:[%s5 + $0x78] sm:$0xf] %v1082
    %1147 = vst [vmem:[%s5 + $0x7c] sm:$0xf] %v1083
  $region29: #{gnn_forward.4} parent=0 // pred_fallthru
    _
  // Predicated region
  $region30: #{gnn_forward.4} parent=0 // pred_check
    _
  $region31: #{gnn_forward.4} parent=0 // pred_check_branch
    %1149 = sbr.rel (0) target = $region33
  $region32: #{gnn_forward.4} parent=0 // pred_region
    _
  $region33: #{gnn_forward.4} parent=0 // pred_fallthru
    _
  // Predicated region
  $region34: #{gnn_forward.4} parent=0 // pred_check
    _
  $region35: #{gnn_forward.4} parent=0 // pred_check_branch
    %1151 = sbr.rel (0) target = $region37
  $region36: #{gnn_forward.4} parent=0 // pred_region
    _
  $region37: #{gnn_forward.4} parent=0 // pred_fallthru
    _

</llo_original>
